<compile_context>
chip_gen: v7x
topology: tpu7x:2x2x1
jax: 0.10.0
libtpu: 0.0.40
codegen_flags: <defaults>
</compile_context>

<pallas_src>
import jax
import jax.numpy as jnp
from jax.experimental import pallas as pl
from jax.experimental.pallas import tpu as pltpu

LEAKY_SLOPE = 0.2
BN_EPS = 1e-5
LANE = 128


def _leaky_relu(h):
    return jnp.where(h >= 0, h, LEAKY_SLOPE * h)


def _bn_leaky(h, gamma, beta):
    """Training-mode BatchNorm1d (biased batch variance) + LeakyReLU, folded.

    `centered` is computed once and reused for both variance and the
    normalization; gamma is folded into the per-feature rsqrt scale so the
    per-element work is one mul + one add (plus the shared sub/square).
    """
    mean = jnp.mean(h, axis=0, keepdims=True)
    centered = h - mean
    var = jnp.mean(centered * centered, axis=0, keepdims=True)
    scale = gamma * jax.lax.rsqrt(var + BN_EPS)          # (1, F): cheap, rsqrt -> EUP
    return _leaky_relu(centered * scale + beta)


def encoder_kernel(
    x_ref,                     # (B, In)   bf16
    w0_ref, b0_ref,            # (In, L)   bf16, (1, L)  f32
    w1_ref, g1_ref, be1_ref,   # (L, 2L)   bf16, (1, 2L) f32 x2   (bias dead under BN)
    w2_ref, g2_ref, be2_ref,   # (2L, 4L)  bf16, (1, 4L) f32 x2   (bias dead under BN)
    w3_ref, b3_ref,            # (4L, Hp)  bf16, (1, Hp) f32      (lane-padded)
    out_ref,                   # (B, Hp)   f32 (lane-dense store)
):
    # initial layer: Linear + LeakyReLU
    h = jnp.dot(x_ref[...], w0_ref[...], preferred_element_type=jnp.float32)
    h = _leaky_relu(h + b0_ref[...])

    # middle block 1: Linear (pre-BN bias removed) + BatchNorm + LeakyReLU
    h = jnp.dot(h.astype(jnp.bfloat16), w1_ref[...],
                preferred_element_type=jnp.float32)
    h = _bn_leaky(h, g1_ref[...], be1_ref[...])

    # middle block 2: Linear (pre-BN bias removed) + BatchNorm + LeakyReLU
    h = jnp.dot(h.astype(jnp.bfloat16), w2_ref[...],
                preferred_element_type=jnp.float32)
    h = _bn_leaky(h, g2_ref[...], be2_ref[...])

    # final layer: Linear, output padded to a multiple of 128 lanes
    out_ref[...] = (
        jnp.dot(h.astype(jnp.bfloat16), w3_ref[...],
                preferred_element_type=jnp.float32)
        + b3_ref[...]
    ).astype(out_ref.dtype)


def pack_kernel_params(p):
    """f32 PyTorch-style params -> kernel-ready params (bf16 weights, padded final layer)."""
    bf = lambda a: a.astype(jnp.bfloat16)
    H = p["w3"].shape[1]
    Hp = ((H + LANE - 1) // LANE) * LANE
    Hp = max(Hp, LANE)
    w3p = jnp.zeros((p["w3"].shape[0], Hp), jnp.bfloat16).at[:, :H].set(bf(p["w3"]))
    b3p = jnp.zeros((1, Hp), jnp.float32).at[:, :H].set(p["b3"])
    return dict(
        w0=bf(p["w0"]), b0=p["b0"],
        w1=bf(p["w1"]), g1=p["g1"], be1=p["be1"],
        w2=bf(p["w2"]), g2=p["g2"], be2=p["be2"],
        w3=w3p, b3=b3p,
        hidden=H, hidden_padded=Hp,
    )


def encoder_forward(x, kp):
    """x: (B, input_size) f32. kp: output of pack_kernel_params."""
    B, in_dim = x.shape
    L = kp["w0"].shape[1]
    H, Hp = kp["hidden"], kp["hidden_padded"]

    args = (
        x.astype(jnp.bfloat16),
        kp["w0"], kp["b0"],
        kp["w1"], kp["g1"], kp["be1"],
        kp["w2"], kp["g2"], kp["be2"],
        kp["w3"], kp["b3"],
    )

    # Advisory cost estimate (matmul flops dominate; rsqrt per BN feature).
    flops = 2 * B * (in_dim * L + L * 2 * L + 2 * L * 4 * L + 4 * L * Hp)
    bytes_in = sum(int(a.size) * a.dtype.itemsize for a in args)
    bytes_accessed = bytes_in + B * Hp * 4
    transcendentals = 6 * L  # rsqrt over 2L + 4L features

    # VMEM budget: everything is single-block resident; clamp to a value that is
    # safe on v7x (64 MiB physical, 32 MiB scoped default) and above v5e's 16 MiB.
    est_vmem = bytes_accessed + 4 * B * 4 * L * 4   # f32 activation headroom
    vmem_limit = int(min(32 * 1024 * 1024, max(8 * 1024 * 1024, 2 * est_vmem)))

    vmem_spec = pl.BlockSpec(memory_space=pltpu.MemorySpace.VMEM)
    out = pl.pallas_call(
        encoder_kernel,
        out_shape=jax.ShapeDtypeStruct((B, Hp), jnp.float32),
        in_specs=[vmem_spec] * len(args),
        out_specs=vmem_spec,
        compiler_params=pltpu.CompilerParams(vmem_limit_bytes=vmem_limit),
        cost_estimate=pl.CostEstimate(
            flops=int(flops),
            transcendentals=int(transcendentals),
            bytes_accessed=int(bytes_accessed),
        ),
    )(*args)
    return out[:, :H]


def init_params(key, input_size, layer_size, hidden_dim):
    """PyTorch-default-like init (U[-1/sqrt(fan_in), +]); all f32."""
    dims = [input_size, layer_size, layer_size * 2, layer_size * 4, hidden_dim]
    params = {}
    keys = jax.random.split(key, 8)

    def linear(kw, kb, fan_in, fan_out):
        bound = 1.0 / jnp.sqrt(float(fan_in))
        w = jax.random.uniform(kw, (fan_in, fan_out), jnp.float32, -bound, bound)
        b = jax.random.uniform(kb, (1, fan_out), jnp.float32, -bound, bound)
        return w, b

    params["w0"], params["b0"] = linear(keys[0], keys[1], dims[0], dims[1])
    params["w1"], params["b1"] = linear(keys[2], keys[3], dims[1], dims[2])
    params["w2"], params["b2"] = linear(keys[4], keys[5], dims[2], dims[3])
    params["w3"], params["b3"] = linear(keys[6], keys[7], dims[3], dims[4])
    # BatchNorm1d affine params (PyTorch default init): weight=1, bias=0.
    params["g1"] = jnp.ones((1, dims[2]), jnp.float32)
    params["be1"] = jnp.zeros((1, dims[2]), jnp.float32)
    params["g2"] = jnp.ones((1, dims[3]), jnp.float32)
    params["be2"] = jnp.zeros((1, dims[3]), jnp.float32)
    return params


def reference_forward_f32(x, p):
    """Pure-f32 PyTorch-semantics reference (keeps the pre-BN biases that the
    kernel drops — BN's mean subtraction makes them mathematically dead)."""
    def bn(h, g, b):
        m = jnp.mean(h, axis=0, keepdims=True)
        v = jnp.mean((h - m) * (h - m), axis=0, keepdims=True)
        return (h - m) * jax.lax.rsqrt(v + BN_EPS) * g + b

    h = _leaky_relu(x @ p["w0"] + p["b0"])
    h = _leaky_relu(bn(h @ p["w1"] + p["b1"], p["g1"], p["be1"]))
    h = _leaky_relu(bn(h @ p["w2"] + p["b2"], p["g2"], p["be2"]))
    return h @ p["w3"] + p["b3"]


def reference_forward_mixed(x, kp):
    """Matched-precision reference: same bf16-operand / f32-accumulate recipe."""
    def dot(a, w):
        return jnp.dot(a.astype(jnp.bfloat16), w, preferred_element_type=jnp.float32)

    h = _leaky_relu(dot(x, kp["w0"]) + kp["b0"])
    h = _bn_leaky(dot(h, kp["w1"]), kp["g1"], kp["be1"])
    h = _bn_leaky(dot(h, kp["w2"]), kp["g2"], kp["be2"])
    out = dot(h, kp["w3"]) + kp["b3"]
    return out[:, :kp["hidden"]]


if __name__ == "__main__":
    # MXU/lane-friendly but still small demo shapes:
    # widths 128 -> 64 -> 128 -> 256 -> 32 (padded to 128 for the store).
    batch = 256
    input_size = 128
    layer_size = 64
    hidden_dim = 32

    key = jax.random.PRNGKey(0)
    kx, kp_key = jax.random.split(key)
    x = jax.random.normal(kx, (batch, input_size), jnp.float32)

    params = init_params(kp_key, input_size, layer_size, hidden_dim)
    kparams = pack_kernel_params(params)

    out = encoder_forward(x, kparams)
    out = jax.block_until_ready(out)
    assert out.shape == (batch, hidden_dim)

    # 1) Tight check vs. a matched-precision (bf16 MXU operands) reference.
    ref_mixed = reference_forward_mixed(x, kparams)
    assert jnp.allclose(out, ref_mixed, atol=1e-3, rtol=1e-3), \
        "mismatch vs matched-precision reference"

    # 2) Loose check vs. the full-f32 PyTorch-semantics reference (includes the
    #    pre-BN biases): bf16 operand rounding is the only difference.
    ref_f32 = reference_forward_f32(x, params)
    assert jnp.allclose(out, ref_f32, atol=5e-2, rtol=5e-2), \
        "mismatch vs f32 reference"

    print("KERNEL_OK")
</pallas_src>

<mosaic_0001>
module attributes {stable_mosaic.version = 11 : i64} {
  func.func @encoder_kernel(%arg0: memref<256x128xbf16, #tpu.memory_space<vmem>>, %arg1: memref<128x64xbf16, #tpu.memory_space<vmem>>, %arg2: memref<1x64xf32, #tpu.memory_space<vmem>>, %arg3: memref<64x128xbf16, #tpu.memory_space<vmem>>, %arg4: memref<1x128xf32, #tpu.memory_space<vmem>>, %arg5: memref<1x128xf32, #tpu.memory_space<vmem>>, %arg6: memref<128x256xbf16, #tpu.memory_space<vmem>>, %arg7: memref<1x256xf32, #tpu.memory_space<vmem>>, %arg8: memref<1x256xf32, #tpu.memory_space<vmem>>, %arg9: memref<256x128xbf16, #tpu.memory_space<vmem>>, %arg10: memref<1x128xf32, #tpu.memory_space<vmem>>, %arg11: memref<256x128xf32, #tpu.memory_space<vmem>>) attributes {dimension_semantics = [], scalar_prefetch = 0 : i64, scratch_operands = 0 : i64, tpu.core_type = #tpu.core_type<tc>} {
    %c0 = arith.constant 0 : index
    %c0_0 = arith.constant 0 : index
    %0 = vector.load %arg0[%c0, %c0_0] : memref<256x128xbf16, #tpu.memory_space<vmem>>, vector<256x128xbf16>
    %c0_1 = arith.constant 0 : index
    %c0_2 = arith.constant 0 : index
    %1 = vector.load %arg1[%c0_1, %c0_2] : memref<128x64xbf16, #tpu.memory_space<vmem>>, vector<128x64xbf16>
    %cst = arith.constant dense<0.000000e+00> : vector<256x64xf32>
    %2 = tpu.matmul %0, %1, %cst {dimension_numbers = #tpu.dot_dimension_numbers<[1], [0], [0], [1], [0, 0, 1, 1], [], []>} : vector<256x128xbf16>, vector<128x64xbf16>, vector<256x64xf32> -> vector<256x64xf32>
    %c0_3 = arith.constant 0 : index
    %c0_4 = arith.constant 0 : index
    %3 = vector.load %arg2[%c0_3, %c0_4] : memref<1x64xf32, #tpu.memory_space<vmem>>, vector<1x64xf32>
    %4 = vector.broadcast %3 : vector<1x64xf32> to vector<256x64xf32>
    %5 = arith.addf %2, %4 : vector<256x64xf32>
    %cst_5 = arith.constant 0.000000e+00 : f32
    %6 = vector.broadcast %cst_5 : f32 to vector<256x64xf32>
    %7 = arith.cmpf oge, %5, %6 : vector<256x64xf32>
    %cst_6 = arith.constant 2.000000e-01 : f32
    %8 = vector.broadcast %cst_6 : f32 to vector<256x64xf32>
    %9 = arith.mulf %8, %5 : vector<256x64xf32>
    %10 = arith.select %7, %5, %9 : vector<256x64xi1>, vector<256x64xf32>
    %11 = arith.truncf %10 : vector<256x64xf32> to vector<256x64xbf16>
    %c0_7 = arith.constant 0 : index
    %c0_8 = arith.constant 0 : index
    %12 = vector.load %arg3[%c0_7, %c0_8] : memref<64x128xbf16, #tpu.memory_space<vmem>>, vector<64x128xbf16>
    %cst_9 = arith.constant dense<0.000000e+00> : vector<256x128xf32>
    %13 = tpu.matmul %11, %12, %cst_9 {dimension_numbers = #tpu.dot_dimension_numbers<[1], [0], [0], [1], [0, 0, 1, 1], [], []>} : vector<256x64xbf16>, vector<64x128xbf16>, vector<256x128xf32> -> vector<256x128xf32>
    %c0_10 = arith.constant 0 : index
    %c0_11 = arith.constant 0 : index
    %14 = vector.load %arg4[%c0_10, %c0_11] : memref<1x128xf32, #tpu.memory_space<vmem>>, vector<1x128xf32>
    %c0_12 = arith.constant 0 : index
    %c0_13 = arith.constant 0 : index
    %15 = vector.load %arg5[%c0_12, %c0_13] : memref<1x128xf32, #tpu.memory_space<vmem>>, vector<1x128xf32>
    %cst_14 = arith.constant dense<0.000000e+00> : vector<128xf32>
    %16 = vector.multi_reduction <add>, %13, %cst_14 [0] : vector<256x128xf32> to vector<128xf32>
    %17 = vector.shape_cast %16 : vector<128xf32> to vector<1x128xf32>
    %cst_15 = arith.constant 2.560000e+02 : f32
    %18 = vector.broadcast %cst_15 : f32 to vector<1x128xf32>
    %19 = arith.divf %17, %18 : vector<1x128xf32>
    %20 = vector.broadcast %19 : vector<1x128xf32> to vector<256x128xf32>
    %21 = arith.subf %13, %20 : vector<256x128xf32>
    %22 = arith.mulf %21, %21 : vector<256x128xf32>
    %cst_16 = arith.constant dense<0.000000e+00> : vector<128xf32>
    %23 = vector.multi_reduction <add>, %22, %cst_16 [0] : vector<256x128xf32> to vector<128xf32>
    %24 = vector.shape_cast %23 : vector<128xf32> to vector<1x128xf32>
    %cst_17 = arith.constant 2.560000e+02 : f32
    %25 = vector.broadcast %cst_17 : f32 to vector<1x128xf32>
    %26 = arith.divf %24, %25 : vector<1x128xf32>
    %cst_18 = arith.constant 9.99999974E-6 : f32
    %27 = vector.broadcast %cst_18 : f32 to vector<1x128xf32>
    %28 = arith.addf %26, %27 : vector<1x128xf32>
    %29 = math.rsqrt %28 : vector<1x128xf32>
    %30 = arith.mulf %14, %29 : vector<1x128xf32>
    %31 = vector.broadcast %30 : vector<1x128xf32> to vector<256x128xf32>
    %32 = arith.mulf %21, %31 : vector<256x128xf32>
    %33 = vector.broadcast %15 : vector<1x128xf32> to vector<256x128xf32>
    %34 = arith.addf %32, %33 : vector<256x128xf32>
    %cst_19 = arith.constant 0.000000e+00 : f32
    %35 = vector.broadcast %cst_19 : f32 to vector<256x128xf32>
    %36 = arith.cmpf oge, %34, %35 : vector<256x128xf32>
    %cst_20 = arith.constant 2.000000e-01 : f32
    %37 = vector.broadcast %cst_20 : f32 to vector<256x128xf32>
    %38 = arith.mulf %37, %34 : vector<256x128xf32>
    %39 = arith.select %36, %34, %38 : vector<256x128xi1>, vector<256x128xf32>
    %40 = arith.truncf %39 : vector<256x128xf32> to vector<256x128xbf16>
    %c0_21 = arith.constant 0 : index
    %c0_22 = arith.constant 0 : index
    %41 = vector.load %arg6[%c0_21, %c0_22] : memref<128x256xbf16, #tpu.memory_space<vmem>>, vector<128x256xbf16>
    %cst_23 = arith.constant dense<0.000000e+00> : vector<256x256xf32>
    %42 = tpu.matmul %40, %41, %cst_23 {dimension_numbers = #tpu.dot_dimension_numbers<[1], [0], [0], [1], [0, 0, 1, 1], [], []>} : vector<256x128xbf16>, vector<128x256xbf16>, vector<256x256xf32> -> vector<256x256xf32>
    %c0_24 = arith.constant 0 : index
    %c0_25 = arith.constant 0 : index
    %43 = vector.load %arg7[%c0_24, %c0_25] : memref<1x256xf32, #tpu.memory_space<vmem>>, vector<1x256xf32>
    %c0_26 = arith.constant 0 : index
    %c0_27 = arith.constant 0 : index
    %44 = vector.load %arg8[%c0_26, %c0_27] : memref<1x256xf32, #tpu.memory_space<vmem>>, vector<1x256xf32>
    %cst_28 = arith.constant dense<0.000000e+00> : vector<256xf32>
    %45 = vector.multi_reduction <add>, %42, %cst_28 [0] : vector<256x256xf32> to vector<256xf32>
    %46 = vector.shape_cast %45 : vector<256xf32> to vector<1x256xf32>
    %cst_29 = arith.constant 2.560000e+02 : f32
    %47 = vector.broadcast %cst_29 : f32 to vector<1x256xf32>
    %48 = arith.divf %46, %47 : vector<1x256xf32>
    %49 = vector.broadcast %48 : vector<1x256xf32> to vector<256x256xf32>
    %50 = arith.subf %42, %49 : vector<256x256xf32>
    %51 = arith.mulf %50, %50 : vector<256x256xf32>
    %cst_30 = arith.constant dense<0.000000e+00> : vector<256xf32>
    %52 = vector.multi_reduction <add>, %51, %cst_30 [0] : vector<256x256xf32> to vector<256xf32>
    %53 = vector.shape_cast %52 : vector<256xf32> to vector<1x256xf32>
    %cst_31 = arith.constant 2.560000e+02 : f32
    %54 = vector.broadcast %cst_31 : f32 to vector<1x256xf32>
    %55 = arith.divf %53, %54 : vector<1x256xf32>
    %cst_32 = arith.constant 9.99999974E-6 : f32
    %56 = vector.broadcast %cst_32 : f32 to vector<1x256xf32>
    %57 = arith.addf %55, %56 : vector<1x256xf32>
    %58 = math.rsqrt %57 : vector<1x256xf32>
    %59 = arith.mulf %43, %58 : vector<1x256xf32>
    %60 = vector.broadcast %59 : vector<1x256xf32> to vector<256x256xf32>
    %61 = arith.mulf %50, %60 : vector<256x256xf32>
    %62 = vector.broadcast %44 : vector<1x256xf32> to vector<256x256xf32>
    %63 = arith.addf %61, %62 : vector<256x256xf32>
    %cst_33 = arith.constant 0.000000e+00 : f32
    %64 = vector.broadcast %cst_33 : f32 to vector<256x256xf32>
    %65 = arith.cmpf oge, %63, %64 : vector<256x256xf32>
    %cst_34 = arith.constant 2.000000e-01 : f32
    %66 = vector.broadcast %cst_34 : f32 to vector<256x256xf32>
    %67 = arith.mulf %66, %63 : vector<256x256xf32>
    %68 = arith.select %65, %63, %67 : vector<256x256xi1>, vector<256x256xf32>
    %69 = arith.truncf %68 : vector<256x256xf32> to vector<256x256xbf16>
    %c0_35 = arith.constant 0 : index
    %c0_36 = arith.constant 0 : index
    %70 = vector.load %arg9[%c0_35, %c0_36] : memref<256x128xbf16, #tpu.memory_space<vmem>>, vector<256x128xbf16>
    %cst_37 = arith.constant dense<0.000000e+00> : vector<256x128xf32>
    %71 = tpu.matmul %69, %70, %cst_37 {dimension_numbers = #tpu.dot_dimension_numbers<[1], [0], [0], [1], [0, 0, 1, 1], [], []>} : vector<256x256xbf16>, vector<256x128xbf16>, vector<256x128xf32> -> vector<256x128xf32>
    %c0_38 = arith.constant 0 : index
    %c0_39 = arith.constant 0 : index
    %72 = vector.load %arg10[%c0_38, %c0_39] : memref<1x128xf32, #tpu.memory_space<vmem>>, vector<1x128xf32>
    %73 = vector.broadcast %72 : vector<1x128xf32> to vector<256x128xf32>
    %74 = arith.addf %71, %73 : vector<256x128xf32>
    %c0_40 = arith.constant 0 : index
    %c0_41 = arith.constant 0 : index
    %75 = vector.load %arg11[%c0_40, %c0_41] : memref<256x128xf32, #tpu.memory_space<vmem>>, vector<256x128xf32>
    tpu.vector_store %arg11[%c0_40, %c0_41], %74 {strides = array<i32>} : memref<256x128xf32, #tpu.memory_space<vmem>>, vector<256x128xf32>,
    return
  }
}

</mosaic_0001>

<llo_original>
// kernel: tpu_custom_call.1
$region0: #{tpu_custom_call.1}
  #allocation0 [shape = 'u32[]', space=smem, size = 0x4, offset = 0x4, fixed_abs, tag = 'smem constant byte address 0x4 - core index']
  #allocation1 [shape = 'u32[144,128]{1,0:T(1,128)}', space=vmem, size = 0x12000, scoped, tag = 'internal scratch']
  %s0 = inlined_call_operand.hbm [shape: bf16[256,128], index: 0, kind: input, shape index: {}]
  %s1 = inlined_call_operand.vmem [shape: bf16[128,64], index: 1, kind: input, shape index: {}]
  %s2 = inlined_call_operand.hbm [shape: f32[1,64], index: 2, kind: input, shape index: {}]
  %s3 = inlined_call_operand.hbm [shape: bf16[64,128], index: 3, kind: input, shape index: {}]
  %s4 = inlined_call_operand.hbm [shape: f32[1,128], index: 4, kind: input, shape index: {}]
  %s5 = inlined_call_operand.hbm [shape: f32[1,128], index: 5, kind: input, shape index: {}]
  %s6 = inlined_call_operand.hbm [shape: bf16[128,256], index: 6, kind: input, shape index: {}]
  %s7 = inlined_call_operand.vmem [shape: f32[1,256], index: 7, kind: input, shape index: {}]
  %s8 = inlined_call_operand.hbm [shape: f32[1,256], index: 8, kind: input, shape index: {}]
  %s9 = inlined_call_operand.vmem [shape: bf16[256,128], index: 9, kind: input, shape index: {}]
  %s10 = inlined_call_operand.vmem [shape: f32[1,128], index: 10, kind: input, shape index: {}]
  %s11 = inlined_call_operand.hbm [shape: f32[256,128], index: 11, kind: output, shape index: {}]
  %s12 = sld [smem:[#allocation0]]
  $region82: #{tpu_custom_call.1} parent=0
    _
  %s14 = ssub.s32 1, %s12
  %s15 = scalar_select 0, %s14, %s12
  $region1: #{tpu_custom_call.1} parent=0
    #allocation2 [shape = 'u8[65536]{0}', space=vmem, size = 0x10000, scoped, tag = 'input window, operand 0, single buffered']
    #allocation3 [shape = 's32[1]{0}', space=sflag, size = 0x4, scoped, tag = 'scoped memory for tpu_custom_call.1']
    #allocation4 [shape = 's32[1]{0}', space=sflag, size = 0x4, scoped, tag = 'scoped memory for tpu_custom_call.1']
    #allocation5 [shape = 'u8[512]{0}', space=vmem, size = 0x400, scoped, tag = 'input window, operand 2, single buffered']
    #allocation6 [shape = 's32[1]{0}', space=sflag, size = 0x4, scoped, tag = 'scoped memory for tpu_custom_call.1']
    #allocation7 [shape = 'u8[16384]{0}', space=vmem, size = 0x4000, scoped, tag = 'input window, operand 3, single buffered']
    #allocation8 [shape = 'u8[512]{0}', space=vmem, size = 0x400, scoped, tag = 'input window, operand 4, single buffered']
    #allocation9 [shape = 's32[1]{0}', space=sflag, size = 0x4, scoped, tag = 'scoped memory for tpu_custom_call.1']
    #allocation10 [shape = 'u8[512]{0}', space=vmem, size = 0x400, scoped, tag = 'input window, operand 5, single buffered']
    #allocation11 [shape = 'u8[65536]{0}', space=vmem, size = 0x10000, scoped, tag = 'input window, operand 6, single buffered']
    #allocation12 [shape = 's32[1]{0}', space=sflag, size = 0x4, scoped, tag = 'scoped memory for tpu_custom_call.1']
    #allocation13 [shape = 'u8[1024]{0}', space=vmem, size = 0x400, scoped, tag = 'input window, operand 8, single buffered']
    #allocation14 [shape = 'u8[131072]{0}', space=vmem, size = 0x20000, scoped, tag = 'output window, operand 0, single buffered']
    %16 = vsyncpa [#allocation3], 0
    %17 = vsyncpa [#allocation6], 0
    %18 = vsyncpa [#allocation9], 0
    %19 = vsyncpa [#allocation12], 0
    %20 = vsyncpa [#allocation4], 0
    // Predicated region
    $region2: #{tpu_custom_call.1} parent=1 // pred_check
      _
    $region3: #{tpu_custom_call.1} parent=1 // pred_check_branch
      %22 = sbr.rel (0) target = $region5
    $region4: #{tpu_custom_call.1} parent=1 // pred_region
      %s24 = ssub.s32 2048, 2048
      %25 = vsyncadd [#allocation3], %s24
      %s26 = sshll.u32 [#allocation2], 4
      %s27 = int_to_ptr.vmem [resolvable:$true] %s26
      %32 = dma.hbm_to_vmem [thread:$0]  %s0, 2048, %s27, [#allocation3], 64, 64, 4
    $region5: #{tpu_custom_call.1} parent=1 // pred_fallthru
      _
    // Predicated region
    $region6: #{tpu_custom_call.1} parent=1 // pred_check
      _
    $region7: #{tpu_custom_call.1} parent=1 // pred_check_branch
      %34 = sbr.rel (0) target = $region9
    $region8: #{tpu_custom_call.1} parent=1 // pred_region
      _
    $region9: #{tpu_custom_call.1} parent=1 // pred_fallthru
      _
    // Predicated region
    $region10: #{tpu_custom_call.1} parent=1 // pred_check
      _
    $region11: #{tpu_custom_call.1} parent=1 // pred_check_branch
      %36 = sbr.rel (0) target = $region13
    $region12: #{tpu_custom_call.1} parent=1 // pred_region
      %s38 = ssub.s32 16, 16
      %39 = vsyncadd [#allocation6], %s38
      %s41 = sshll.u32 [#allocation5], 4
      %s42 = int_to_ptr.vmem [resolvable:$true] %s41
      %44 = dma.hbm_to_vmem [thread:$0]  %s2, 16, %s42, [#allocation6]
    $region13: #{tpu_custom_call.1} parent=1 // pred_fallthru
      _
    // Predicated region
    $region14: #{tpu_custom_call.1} parent=1 // pred_check
      _
    $region15: #{tpu_custom_call.1} parent=1 // pred_check_branch
      %46 = sbr.rel (0) target = $region17
    $region16: #{tpu_custom_call.1} parent=1 // pred_region
      %s48 = ssub.s32 512, 512
      %49 = vsyncadd [#allocation6], %s48
      %s50 = sshll.u32 [#allocation7], 4
      %s51 = int_to_ptr.vmem [resolvable:$true] %s50
      %56 = dma.hbm_to_vmem [thread:$0]  %s3, 512, %s51, [#allocation6], 64, 64, 4
    $region17: #{tpu_custom_call.1} parent=1 // pred_fallthru
      _
    // Predicated region
    $region18: #{tpu_custom_call.1} parent=1 // pred_check
      _
    $region19: #{tpu_custom_call.1} parent=1 // pred_check_branch
      %58 = sbr.rel (0) target = $region21
    $region20: #{tpu_custom_call.1} parent=1 // pred_region
      %s60 = ssub.s32 16, 16
      %61 = vsyncadd [#allocation9], %s60
      %s63 = sshll.u32 [#allocation8], 4
      %s64 = int_to_ptr.vmem [resolvable:$true] %s63
      %66 = dma.hbm_to_vmem [thread:$0]  %s4, 16, %s64, [#allocation9]
    $region21: #{tpu_custom_call.1} parent=1 // pred_fallthru
      _
    // Predicated region
    $region22: #{tpu_custom_call.1} parent=1 // pred_check
      _
    $region23: #{tpu_custom_call.1} parent=1 // pred_check_branch
      %68 = sbr.rel (0) target = $region25
    $region24: #{tpu_custom_call.1} parent=1 // pred_region
      %s70 = ssub.s32 16, 16
      %71 = vsyncadd [#allocation9], %s70
      %s73 = sshll.u32 [#allocation10], 4
      %s74 = int_to_ptr.vmem [resolvable:$true] %s73
      %76 = dma.hbm_to_vmem [thread:$0]  %s5, 16, %s74, [#allocation9]
    $region25: #{tpu_custom_call.1} parent=1 // pred_fallthru
      _
    // Predicated region
    $region26: #{tpu_custom_call.1} parent=1 // pred_check
      _
    $region27: #{tpu_custom_call.1} parent=1 // pred_check_branch
      %78 = sbr.rel (0) target = $region29
    $region28: #{tpu_custom_call.1} parent=1 // pred_region
      %s80 = ssub.s32 2048, 2048
      %81 = vsyncadd [#allocation12], %s80
      %s82 = sshll.u32 [#allocation11], 4
      %s83 = int_to_ptr.vmem [resolvable:$true] %s82
      %88 = dma.hbm_to_vmem [thread:$0]  %s6, 2048, %s83, [#allocation12], 128, 128, 8
    $region29: #{tpu_custom_call.1} parent=1 // pred_fallthru
      _
    // Predicated region
    $region30: #{tpu_custom_call.1} parent=1 // pred_check
      _
    $region31: #{tpu_custom_call.1} parent=1 // pred_check_branch
      %90 = sbr.rel (0) target = $region33
    $region32: #{tpu_custom_call.1} parent=1 // pred_region
      _
    $region33: #{tpu_custom_call.1} parent=1 // pred_fallthru
      _
    // Predicated region
    $region34: #{tpu_custom_call.1} parent=1 // pred_check
      _
    $region35: #{tpu_custom_call.1} parent=1 // pred_check_branch
      %92 = sbr.rel (0) target = $region37
    $region36: #{tpu_custom_call.1} parent=1 // pred_region
      %s94 = ssub.s32 32, 32
      %95 = vsyncadd [#allocation12], %s94
      %s97 = sshll.u32 [#allocation13], 4
      %s98 = int_to_ptr.vmem [resolvable:$true] %s97
      %100 = dma.hbm_to_vmem [thread:$0]  %s8, 32, %s98, [#allocation12]
    $region37: #{tpu_custom_call.1} parent=1 // pred_fallthru
      _
    // Predicated region
    $region38: #{tpu_custom_call.1} parent=1 // pred_check
      _
    $region39: #{tpu_custom_call.1} parent=1 // pred_check_branch
      %102 = sbr.rel (0) target = $region41
    $region40: #{tpu_custom_call.1} parent=1 // pred_region
      _
    $region41: #{tpu_custom_call.1} parent=1 // pred_fallthru
      _
    // Predicated region
    $region42: #{tpu_custom_call.1} parent=1 // pred_check
      _
    $region43: #{tpu_custom_call.1} parent=1 // pred_check_branch
      %104 = sbr.rel (0) target = $region45
    $region44: #{tpu_custom_call.1} parent=1 // pred_region
      _
    $region45: #{tpu_custom_call.1} parent=1 // pred_fallthru
      _
    // Predicated region
    $region46: #{tpu_custom_call.1} parent=1 // pred_check
      _
    $region47: #{tpu_custom_call.1} parent=1 // pred_check_branch
      %106 = sbr.rel (0) target = $region49
    $region48: #{tpu_custom_call.1} parent=1 // pred_region
      %107 = dma.done [#allocation3], 2048
    $region49: #{tpu_custom_call.1} parent=1 // pred_fallthru
      _
    // Predicated region
    $region50: #{tpu_custom_call.1} parent=1 // pred_check
      _
    $region51: #{tpu_custom_call.1} parent=1 // pred_check_branch
      %109 = sbr.rel (0) target = $region53
    $region52: #{tpu_custom_call.1} parent=1 // pred_region
      %110 = dma.done [#allocation6], 16
    $region53: #{tpu_custom_call.1} parent=1 // pred_fallthru
      _
    // Predicated region
    $region54: #{tpu_custom_call.1} parent=1 // pred_check
      _
    $region55: #{tpu_custom_call.1} parent=1 // pred_check_branch
      %112 = sbr.rel (0) target = $region57
    $region56: #{tpu_custom_call.1} parent=1 // pred_region
      %113 = dma.done [#allocation6], 512
    $region57: #{tpu_custom_call.1} parent=1 // pred_fallthru
      _
    // Predicated region
    $region58: #{tpu_custom_call.1} parent=1 // pred_check
      _
    $region59: #{tpu_custom_call.1} parent=1 // pred_check_branch
      %115 = sbr.rel (0) target = $region61
    $region60: #{tpu_custom_call.1} parent=1 // pred_region
      %116 = dma.done [#allocation9], 16
    $region61: #{tpu_custom_call.1} parent=1 // pred_fallthru
      _
    // Predicated region
    $region62: #{tpu_custom_call.1} parent=1 // pred_check
      _
    $region63: #{tpu_custom_call.1} parent=1 // pred_check_branch
      %118 = sbr.rel (0) target = $region65
    $region64: #{tpu_custom_call.1} parent=1 // pred_region
      %119 = dma.done [#allocation9], 16
    $region65: #{tpu_custom_call.1} parent=1 // pred_fallthru
      _
    // Predicated region
    $region66: #{tpu_custom_call.1} parent=1 // pred_check
      _
    $region67: #{tpu_custom_call.1} parent=1 // pred_check_branch
      %121 = sbr.rel (0) target = $region69
    $region68: #{tpu_custom_call.1} parent=1 // pred_region
      %122 = dma.done [#allocation12], 2048
    $region69: #{tpu_custom_call.1} parent=1 // pred_fallthru
      _
    // Predicated region
    $region70: #{tpu_custom_call.1} parent=1 // pred_check
      _
    $region71: #{tpu_custom_call.1} parent=1 // pred_check_branch
      %124 = sbr.rel (0) target = $region73
    $region72: #{tpu_custom_call.1} parent=1 // pred_region
      %125 = dma.done [#allocation12], 32
    $region73: #{tpu_custom_call.1} parent=1 // pred_fallthru
      _
    %v127 = vld [vmem:[#allocation2] sm:$0xf]
    %v128 = vld [vmem:[#allocation2 + $0x4] sm:$0xf]
    %v129 = vld [vmem:[#allocation2 + $0x8] sm:$0xf]
    %v130 = vld [vmem:[#allocation2 + $0xc] sm:$0xf]
    %v131 = vld [vmem:[#allocation2 + $0x10] sm:$0xf]
    %v132 = vld [vmem:[#allocation2 + $0x14] sm:$0xf]
    %v133 = vld [vmem:[#allocation2 + $0x18] sm:$0xf]
    %v134 = vld [vmem:[#allocation2 + $0x1c] sm:$0xf]
    %v135 = vld [vmem:[#allocation2 + $0x20] sm:$0xf]
    %v136 = vld [vmem:[#allocation2 + $0x24] sm:$0xf]
    %v137 = vld [vmem:[#allocation2 + $0x28] sm:$0xf]
    %v138 = vld [vmem:[#allocation2 + $0x2c] sm:$0xf]
    %v139 = vld [vmem:[#allocation2 + $0x30] sm:$0xf]
    %v140 = vld [vmem:[#allocation2 + $0x34] sm:$0xf]
    %v141 = vld [vmem:[#allocation2 + $0x38] sm:$0xf]
    %v142 = vld [vmem:[#allocation2 + $0x3c] sm:$0xf]
    %v143 = vld [vmem:[#allocation2 + $0x40] sm:$0xf]
    %v144 = vld [vmem:[#allocation2 + $0x44] sm:$0xf]
    %v145 = vld [vmem:[#allocation2 + $0x48] sm:$0xf]
    %v146 = vld [vmem:[#allocation2 + $0x4c] sm:$0xf]
    %v147 = vld [vmem:[#allocation2 + $0x50] sm:$0xf]
    %v148 = vld [vmem:[#allocation2 + $0x54] sm:$0xf]
    %v149 = vld [vmem:[#allocation2 + $0x58] sm:$0xf]
    %v150 = vld [vmem:[#allocation2 + $0x5c] sm:$0xf]
    %v151 = vld [vmem:[#allocation2 + $0x60] sm:$0xf]
    %v152 = vld [vmem:[#allocation2 + $0x64] sm:$0xf]
    %v153 = vld [vmem:[#allocation2 + $0x68] sm:$0xf]
    %v154 = vld [vmem:[#allocation2 + $0x6c] sm:$0xf]
    %v155 = vld [vmem:[#allocation2 + $0x70] sm:$0xf]
    %v156 = vld [vmem:[#allocation2 + $0x74] sm:$0xf]
    %v157 = vld [vmem:[#allocation2 + $0x78] sm:$0xf]
    %v158 = vld [vmem:[#allocation2 + $0x7c] sm:$0xf]
    %v159 = vld [vmem:[%s1] sm:$0xf]
    %v160 = vld [vmem:[%s1 + $0x4] sm:$0xf]
    %v161 = vld [vmem:[%s1 + $0x8] sm:$0xf]
    %v162 = vld [vmem:[%s1 + $0xc] sm:$0xf]
    %v163 = vld [vmem:[%s1 + $0x10] sm:$0xf]
    %v164 = vld [vmem:[%s1 + $0x14] sm:$0xf]
    %v165 = vld [vmem:[%s1 + $0x18] sm:$0xf]
    %v166 = vld [vmem:[%s1 + $0x1c] sm:$0xf]
    %v167 = vld [vmem:[%s1 + $0x20] sm:$0xf]
    %v168 = vld [vmem:[%s1 + $0x24] sm:$0xf]
    %v169 = vld [vmem:[%s1 + $0x28] sm:$0xf]
    %v170 = vld [vmem:[%s1 + $0x2c] sm:$0xf]
    %v171 = vld [vmem:[%s1 + $0x30] sm:$0xf]
    %v172 = vld [vmem:[%s1 + $0x34] sm:$0xf]
    %v173 = vld [vmem:[%s1 + $0x38] sm:$0xf]
    %v174 = vld [vmem:[%s1 + $0x3c] sm:$0xf]
    %v175 = vld [vmem:[#allocation5] sm:$0x1]
    %v177 = vlaneseq
    %v178 = vshrl.u32 %v177, 7
    %v179 = vsub.s32 0, %v178
    %v180 = vrot.slane %v175, %v179
    %v214 = vunpack.c.l.b16 %v127
    %v215 = vunpack.c.l.b16 %v128
    %v216 = vunpack.c.l.b16 %v129
    %v217 = vunpack.c.l.b16 %v130
    %v218 = vunpack.c.l.b16 %v131
    %v219 = vunpack.c.l.b16 %v132
    %v220 = vunpack.c.l.b16 %v133
    %v221 = vunpack.c.l.b16 %v134
    %v222 = vunpack.c.l.b16 %v135
    %v223 = vunpack.c.l.b16 %v136
    %v224 = vunpack.c.l.b16 %v137
    %v225 = vunpack.c.l.b16 %v138
    %v226 = vunpack.c.l.b16 %v139
    %v227 = vunpack.c.l.b16 %v140
    %v228 = vunpack.c.l.b16 %v141
    %v229 = vunpack.c.l.b16 %v142
    %v230 = vunpack.c.l.b16 %v143
    %v231 = vunpack.c.l.b16 %v144
    %v232 = vunpack.c.l.b16 %v145
    %v233 = vunpack.c.l.b16 %v146
    %v234 = vunpack.c.l.b16 %v147
    %v235 = vunpack.c.l.b16 %v148
    %v236 = vunpack.c.l.b16 %v149
    %v237 = vunpack.c.l.b16 %v150
    %v238 = vunpack.c.l.b16 %v151
    %v239 = vunpack.c.l.b16 %v152
    %v240 = vunpack.c.l.b16 %v153
    %v241 = vunpack.c.l.b16 %v154
    %v242 = vunpack.c.l.b16 %v155
    %v243 = vunpack.c.l.b16 %v156
    %v244 = vunpack.c.l.b16 %v157
    %v245 = vunpack.c.l.b16 %v158
    %v246 = vpack.c.b16 %v215, %v214
    %v247 = vpack.c.b16 %v217, %v216
    %v248 = vpack.c.b16 %v219, %v218
    %v249 = vpack.c.b16 %v221, %v220
    %v250 = vpack.c.b16 %v223, %v222
    %v251 = vpack.c.b16 %v225, %v224
    %v252 = vpack.c.b16 %v227, %v226
    %v253 = vpack.c.b16 %v229, %v228
    %v254 = vpack.c.b16 %v231, %v230
    %v255 = vpack.c.b16 %v233, %v232
    %v256 = vpack.c.b16 %v235, %v234
    %v257 = vpack.c.b16 %v237, %v236
    %v258 = vpack.c.b16 %v239, %v238
    %v259 = vpack.c.b16 %v241, %v240
    %v260 = vpack.c.b16 %v243, %v242
    %v261 = vpack.c.b16 %v245, %v244
    %v294 = vunpack.c.l.b16 %v159
    %v295 = vunpack.c.l.b16 %v160
    %v296 = vunpack.c.l.b16 %v161
    %v297 = vunpack.c.l.b16 %v162
    %v298 = vunpack.c.l.b16 %v163
    %v299 = vunpack.c.l.b16 %v164
    %v300 = vunpack.c.l.b16 %v165
    %v301 = vunpack.c.l.b16 %v166
    %v302 = vunpack.c.l.b16 %v167
    %v303 = vunpack.c.l.b16 %v168
    %v304 = vunpack.c.l.b16 %v169
    %v305 = vunpack.c.l.b16 %v170
    %v306 = vunpack.c.l.b16 %v171
    %v307 = vunpack.c.l.b16 %v172
    %v308 = vunpack.c.l.b16 %v173
    %v309 = vunpack.c.l.b16 %v174
    %v310 = vpack.c.b16 %v295, %v294
    %v311 = vpack.c.b16 %v297, %v296
    %v312 = vpack.c.b16 %v299, %v298
    %v313 = vpack.c.b16 %v301, %v300
    %v314 = vpack.c.b16 %v303, %v302
    %v315 = vpack.c.b16 %v305, %v304
    %v316 = vpack.c.b16 %v307, %v306
    %v317 = vpack.c.b16 %v309, %v308
    %326 = vmatprep.subr.bf16.mxu0 0
    %327 = vmatpush1.bf16.msra.mxu0 %v310
    %328 = vmatprep.subr.bf16.mxu0 0
    %329 = vmatpush1.bf16.msra.mxu0 %v311
    %330 = vmatprep.subr.bf16.mxu0 0
    %331 = vmatpush1.bf16.msra.mxu0 %v312
    %332 = vmatprep.subr.bf16.mxu0 0
    %333 = vmatpush1.bf16.msra.mxu0 %v313
    %334 = vmatprep.subr.bf16.mxu0 0
    %335 = vmatpush1.bf16.msra.mxu0 %v314
    %336 = vmatprep.subr.bf16.mxu0 0
    %337 = vmatpush1.bf16.msra.mxu0 %v315
    %338 = vmatprep.subr.bf16.mxu0 0
    %339 = vmatpush1.bf16.msra.mxu0 %v316
    %340 = vmatprep.subr.bf16.mxu0 0
    %341 = vmatpush1.bf16.msra.mxu0 %v317
    %342 = vmatprep.subr.bf16.mxu0 0
    %343 = vmatpush1.bf16.msra.mxu0 0
    %344 = vmatprep.subr.bf16.mxu0 0
    %345 = vmatpush1.bf16.msra.mxu0 0
    %346 = vmatprep.subr.bf16.mxu0 0
    %347 = vmatpush1.bf16.msra.mxu0 0
    %348 = vmatprep.subr.bf16.mxu0 0
    %349 = vmatpush1.bf16.msra.mxu0 0
    %350 = vmatprep.subr.bf16.mxu0 0
    %351 = vmatpush1.bf16.msra.mxu0 0
    %352 = vmatprep.subr.bf16.mxu0 0
    %353 = vmatpush1.bf16.msra.mxu0 0
    %354 = vmatprep.subr.bf16.mxu0 0
    %355 = vmatpush1.bf16.msra.mxu0 0
    %356 = vmatprep.subr.bf16.mxu0 0
    %357 = vmatpush1.bf16.msra.mxu0 0
    %358 = vmatprep.mubr.bf16.mxu0 0
    %359 = vmatmul.mubr.bf16.gmra.mrb[0].mxu0 %v246
    %v360 = vpop.f32.mrb[0].mxu0
    %v361 = vadd.f32 %v180, %v360
    %v362 = vpop.f32.mrb[0].mxu0
    %v363 = vpop.f32.mrb[0].mxu0
    %v364 = vadd.f32 %v180, %v363
    %v365 = vpop.f32.mrb[0].mxu0
    %366 = vmatprep.mubr.bf16.mxu0 0
    %367 = vmatmul.mubr.bf16.gmra.mrb[0].mxu0 %v247
    %v368 = vpop.f32.mrb[0].mxu0
    %v369 = vadd.f32 %v180, %v368
    %v370 = vpop.f32.mrb[0].mxu0
    %v371 = vpop.f32.mrb[0].mxu0
    %v372 = vadd.f32 %v180, %v371
    %v373 = vpop.f32.mrb[0].mxu0
    %374 = vmatprep.mubr.bf16.mxu0 0
    %375 = vmatmul.mubr.bf16.gmra.mrb[0].mxu0 %v248
    %v376 = vpop.f32.mrb[0].mxu0
    %v377 = vadd.f32 %v180, %v376
    %v378 = vpop.f32.mrb[0].mxu0
    %v379 = vpop.f32.mrb[0].mxu0
    %v380 = vadd.f32 %v180, %v379
    %v381 = vpop.f32.mrb[0].mxu0
    %382 = vmatprep.mubr.bf16.mxu0 0
    %383 = vmatmul.mubr.bf16.gmra.mrb[0].mxu0 %v249
    %v384 = vpop.f32.mrb[0].mxu0
    %v385 = vadd.f32 %v180, %v384
    %v386 = vpop.f32.mrb[0].mxu0
    %v387 = vpop.f32.mrb[0].mxu0
    %v388 = vadd.f32 %v180, %v387
    %v389 = vpop.f32.mrb[0].mxu0
    %390 = vmatprep.mubr.bf16.mxu0 0
    %391 = vmatmul.mubr.bf16.gmra.mrb[0].mxu0 %v250
    %v392 = vpop.f32.mrb[0].mxu0
    %v393 = vadd.f32 %v180, %v392
    %v394 = vpop.f32.mrb[0].mxu0
    %v395 = vpop.f32.mrb[0].mxu0
    %v396 = vadd.f32 %v180, %v395
    %v397 = vpop.f32.mrb[0].mxu0
    %398 = vmatprep.mubr.bf16.mxu0 0
    %399 = vmatmul.mubr.bf16.gmra.mrb[0].mxu0 %v251
    %v400 = vpop.f32.mrb[0].mxu0
    %v401 = vadd.f32 %v180, %v400
    %v402 = vpop.f32.mrb[0].mxu0
    %v403 = vpop.f32.mrb[0].mxu0
    %v404 = vadd.f32 %v180, %v403
    %v405 = vpop.f32.mrb[0].mxu0
    %406 = vmatprep.mubr.bf16.mxu0 0
    %407 = vmatmul.mubr.bf16.gmra.mrb[0].mxu0 %v252
    %v408 = vpop.f32.mrb[0].mxu0
    %v409 = vadd.f32 %v180, %v408
    %v410 = vpop.f32.mrb[0].mxu0
    %v411 = vpop.f32.mrb[0].mxu0
    %v412 = vadd.f32 %v180, %v411
    %v413 = vpop.f32.mrb[0].mxu0
    %414 = vmatprep.mubr.bf16.mxu0 0
    %415 = vmatmul.mubr.bf16.gmra.mrb[0].mxu0 %v253
    %v416 = vpop.f32.mrb[0].mxu0
    %v417 = vadd.f32 %v180, %v416
    %v418 = vpop.f32.mrb[0].mxu0
    %v419 = vpop.f32.mrb[0].mxu0
    %v420 = vadd.f32 %v180, %v419
    %v421 = vpop.f32.mrb[0].mxu0
    %422 = vmatprep.mubr.bf16.mxu0 0
    %423 = vmatmul.mubr.bf16.gmra.mrb[0].mxu0 %v254
    %v424 = vpop.f32.mrb[0].mxu0
    %v425 = vadd.f32 %v180, %v424
    %v426 = vpop.f32.mrb[0].mxu0
    %v427 = vpop.f32.mrb[0].mxu0
    %v428 = vadd.f32 %v180, %v427
    %v429 = vpop.f32.mrb[0].mxu0
    %430 = vmatprep.mubr.bf16.mxu0 0
    %431 = vmatmul.mubr.bf16.gmra.mrb[0].mxu0 %v255
    %v432 = vpop.f32.mrb[0].mxu0
    %v433 = vadd.f32 %v180, %v432
    %v434 = vpop.f32.mrb[0].mxu0
    %v435 = vpop.f32.mrb[0].mxu0
    %v436 = vadd.f32 %v180, %v435
    %v437 = vpop.f32.mrb[0].mxu0
    %438 = vmatprep.mubr.bf16.mxu0 0
    %439 = vmatmul.mubr.bf16.gmra.mrb[0].mxu0 %v256
    %v440 = vpop.f32.mrb[0].mxu0
    %v441 = vadd.f32 %v180, %v440
    %v442 = vpop.f32.mrb[0].mxu0
    %v443 = vpop.f32.mrb[0].mxu0
    %v444 = vadd.f32 %v180, %v443
    %v445 = vpop.f32.mrb[0].mxu0
    %446 = vmatprep.mubr.bf16.mxu0 0
    %447 = vmatmul.mubr.bf16.gmra.mrb[0].mxu0 %v257
    %v448 = vpop.f32.mrb[0].mxu0
    %v449 = vadd.f32 %v180, %v448
    %v450 = vpop.f32.mrb[0].mxu0
    %v451 = vpop.f32.mrb[0].mxu0
    %v452 = vadd.f32 %v180, %v451
    %v453 = vpop.f32.mrb[0].mxu0
    %454 = vmatprep.mubr.bf16.mxu0 0
    %455 = vmatmul.mubr.bf16.gmra.mrb[0].mxu0 %v258
    %v456 = vpop.f32.mrb[0].mxu0
    %v457 = vadd.f32 %v180, %v456
    %v458 = vpop.f32.mrb[0].mxu0
    %v459 = vpop.f32.mrb[0].mxu0
    %v460 = vadd.f32 %v180, %v459
    %v461 = vpop.f32.mrb[0].mxu0
    %462 = vmatprep.mubr.bf16.mxu0 0
    %463 = vmatmul.mubr.bf16.gmra.mrb[0].mxu0 %v259
    %v464 = vpop.f32.mrb[0].mxu0
    %v465 = vadd.f32 %v180, %v464
    %v466 = vpop.f32.mrb[0].mxu0
    %v467 = vpop.f32.mrb[0].mxu0
    %v468 = vadd.f32 %v180, %v467
    %v469 = vpop.f32.mrb[0].mxu0
    %470 = vmatprep.mubr.bf16.mxu0 0
    %471 = vmatmul.mubr.bf16.gmra.mrb[0].mxu0 %v260
    %v472 = vpop.f32.mrb[0].mxu0
    %v473 = vadd.f32 %v180, %v472
    %v474 = vpop.f32.mrb[0].mxu0
    %v475 = vpop.f32.mrb[0].mxu0
    %v476 = vadd.f32 %v180, %v475
    %v477 = vpop.f32.mrb[0].mxu0
    %478 = vmatprep.mubr.bf16.mxu0 0
    %479 = vmatmul.mubr.bf16.gmra.mrb[0].mxu0 %v261
    %v480 = vpop.f32.mrb[0].mxu0
    %v481 = vadd.f32 %v180, %v480
    %v482 = vpop.f32.mrb[0].mxu0
    %v483 = vpop.f32.mrb[0].mxu0
    %v484 = vadd.f32 %v180, %v483
    %v485 = vpop.f32.mrb[0].mxu0
    %486 = vdwg.mxu0
    %vm487 = vcmp.ge.f32.partialorder %v361, 0.0
    %vm488 = vcmp.ge.f32.partialorder %v364, 0.0
    %vm489 = vcmp.ge.f32.partialorder %v369, 0.0
    %vm490 = vcmp.ge.f32.partialorder %v372, 0.0
    %vm491 = vcmp.ge.f32.partialorder %v377, 0.0
    %vm492 = vcmp.ge.f32.partialorder %v380, 0.0
    %vm493 = vcmp.ge.f32.partialorder %v385, 0.0
    %vm494 = vcmp.ge.f32.partialorder %v388, 0.0
    %vm495 = vcmp.ge.f32.partialorder %v393, 0.0
    %vm496 = vcmp.ge.f32.partialorder %v396, 0.0
    %vm497 = vcmp.ge.f32.partialorder %v401, 0.0
    %vm498 = vcmp.ge.f32.partialorder %v404, 0.0
    %vm499 = vcmp.ge.f32.partialorder %v409, 0.0
    %vm500 = vcmp.ge.f32.partialorder %v412, 0.0
    %vm501 = vcmp.ge.f32.partialorder %v417, 0.0
    %vm502 = vcmp.ge.f32.partialorder %v420, 0.0
    %vm503 = vcmp.ge.f32.partialorder %v425, 0.0
    %vm504 = vcmp.ge.f32.partialorder %v428, 0.0
    %vm505 = vcmp.ge.f32.partialorder %v433, 0.0
    %vm506 = vcmp.ge.f32.partialorder %v436, 0.0
    %vm507 = vcmp.ge.f32.partialorder %v441, 0.0
    %vm508 = vcmp.ge.f32.partialorder %v444, 0.0
    %vm509 = vcmp.ge.f32.partialorder %v449, 0.0
    %vm510 = vcmp.ge.f32.partialorder %v452, 0.0
    %vm511 = vcmp.ge.f32.partialorder %v457, 0.0
    %vm512 = vcmp.ge.f32.partialorder %v460, 0.0
    %vm513 = vcmp.ge.f32.partialorder %v465, 0.0
    %vm514 = vcmp.ge.f32.partialorder %v468, 0.0
    %vm515 = vcmp.ge.f32.partialorder %v473, 0.0
    %vm516 = vcmp.ge.f32.partialorder %v476, 0.0
    %vm517 = vcmp.ge.f32.partialorder %v481, 0.0
    %vm518 = vcmp.ge.f32.partialorder %v484, 0.0
    %v519 = vmul.f32 %v361, 0.2
    %v520 = vmul.f32 %v364, 0.2
    %v521 = vmul.f32 %v369, 0.2
    %v522 = vmul.f32 %v372, 0.2
    %v523 = vmul.f32 %v377, 0.2
    %v524 = vmul.f32 %v380, 0.2
    %v525 = vmul.f32 %v385, 0.2
    %v526 = vmul.f32 %v388, 0.2
    %v527 = vmul.f32 %v393, 0.2
    %v528 = vmul.f32 %v396, 0.2
    %v529 = vmul.f32 %v401, 0.2
    %v530 = vmul.f32 %v404, 0.2
    %v531 = vmul.f32 %v409, 0.2
    %v532 = vmul.f32 %v412, 0.2
    %v533 = vmul.f32 %v417, 0.2
    %v534 = vmul.f32 %v420, 0.2
    %v535 = vmul.f32 %v425, 0.2
    %v536 = vmul.f32 %v428, 0.2
    %v537 = vmul.f32 %v433, 0.2
    %v538 = vmul.f32 %v436, 0.2
    %v539 = vmul.f32 %v441, 0.2
    %v540 = vmul.f32 %v444, 0.2
    %v541 = vmul.f32 %v449, 0.2
    %v542 = vmul.f32 %v452, 0.2
    %v543 = vmul.f32 %v457, 0.2
    %v544 = vmul.f32 %v460, 0.2
    %v545 = vmul.f32 %v465, 0.2
    %v546 = vmul.f32 %v468, 0.2
    %v547 = vmul.f32 %v473, 0.2
    %v548 = vmul.f32 %v476, 0.2
    %v549 = vmul.f32 %v481, 0.2
    %v550 = vmul.f32 %v484, 0.2
    %v551 = vsel %vm487, %v361, %v519
    %v552 = vsel %vm488, %v364, %v520
    %v553 = vsel %vm489, %v369, %v521
    %v554 = vsel %vm490, %v372, %v522
    %v555 = vsel %vm491, %v377, %v523
    %v556 = vsel %vm492, %v380, %v524
    %v557 = vsel %vm493, %v385, %v525
    %v558 = vsel %vm494, %v388, %v526
    %v559 = vsel %vm495, %v393, %v527
    %v560 = vsel %vm496, %v396, %v528
    %v561 = vsel %vm497, %v401, %v529
    %v562 = vsel %vm498, %v404, %v530
    %v563 = vsel %vm499, %v409, %v531
    %v564 = vsel %vm500, %v412, %v532
    %v565 = vsel %vm501, %v417, %v533
    %v566 = vsel %vm502, %v420, %v534
    %v567 = vsel %vm503, %v425, %v535
    %v568 = vsel %vm504, %v428, %v536
    %v569 = vsel %vm505, %v433, %v537
    %v570 = vsel %vm506, %v436, %v538
    %v571 = vsel %vm507, %v441, %v539
    %v572 = vsel %vm508, %v444, %v540
    %v573 = vsel %vm509, %v449, %v541
    %v574 = vsel %vm510, %v452, %v542
    %v575 = vsel %vm511, %v457, %v543
    %v576 = vsel %vm512, %v460, %v544
    %v577 = vsel %vm513, %v465, %v545
    %v578 = vsel %vm514, %v468, %v546
    %v579 = vsel %vm515, %v473, %v547
    %v580 = vsel %vm516, %v476, %v548
    %v581 = vsel %vm517, %v481, %v549
    %v582 = vsel %vm518, %v484, %v550
    %v583 = vpack.c.bf16 %v552, %v551
    %v584 = vpack.c.bf16 %v554, %v553
    %v585 = vpack.c.bf16 %v556, %v555
    %v586 = vpack.c.bf16 %v558, %v557
    %v587 = vpack.c.bf16 %v560, %v559
    %v588 = vpack.c.bf16 %v562, %v561
    %v589 = vpack.c.bf16 %v564, %v563
    %v590 = vpack.c.bf16 %v566, %v565
    %v591 = vpack.c.bf16 %v568, %v567
    %v592 = vpack.c.bf16 %v570, %v569
    %v593 = vpack.c.bf16 %v572, %v571
    %v594 = vpack.c.bf16 %v574, %v573
    %v595 = vpack.c.bf16 %v576, %v575
    %v596 = vpack.c.bf16 %v578, %v577
    %v597 = vpack.c.bf16 %v580, %v579
    %v598 = vpack.c.bf16 %v582, %v581
    %v599 = vld [vmem:[#allocation7] sm:$0xf]
    %v600 = vld [vmem:[#allocation7 + $0x4] sm:$0xf]
    %v601 = vld [vmem:[#allocation7 + $0x8] sm:$0xf]
    %v602 = vld [vmem:[#allocation7 + $0xc] sm:$0xf]
    %v603 = vld [vmem:[#allocation7 + $0x10] sm:$0xf]
    %v604 = vld [vmem:[#allocation7 + $0x14] sm:$0xf]
    %v605 = vld [vmem:[#allocation7 + $0x18] sm:$0xf]
    %v606 = vld [vmem:[#allocation7 + $0x1c] sm:$0xf]
    %v615 = vunpack.c.l.b16 %v599
    %v616 = vunpack.c.l.b16 %v600
    %v617 = vunpack.c.l.b16 %v601
    %v618 = vunpack.c.l.b16 %v602
    %v619 = vunpack.c.l.b16 %v603
    %v620 = vunpack.c.l.b16 %v604
    %v621 = vunpack.c.l.b16 %v605
    %v622 = vunpack.c.l.b16 %v606
    %v623 = vpack.c.b16 %v616, %v615
    %v624 = vpack.c.b16 %v618, %v617
    %v625 = vpack.c.b16 %v620, %v619
    %v626 = vpack.c.b16 %v622, %v621
    %vm631 = vcmask 523264
    %v633 = vsel %vm631, %v583, 0
    %v636 = vsel %vm631, %v584, 0
    %v639 = vsel %vm631, %v585, 0
    %v642 = vsel %vm631, %v586, 0
    %v645 = vsel %vm631, %v587, 0
    %v648 = vsel %vm631, %v588, 0
    %v651 = vsel %vm631, %v589, 0
    %v654 = vsel %vm631, %v590, 0
    %v657 = vsel %vm631, %v591, 0
    %v660 = vsel %vm631, %v592, 0
    %v663 = vsel %vm631, %v593, 0
    %v666 = vsel %vm631, %v594, 0
    %v669 = vsel %vm631, %v595, 0
    %v672 = vsel %vm631, %v596, 0
    %v675 = vsel %vm631, %v597, 0
    %v678 = vsel %vm631, %v598, 0
    %680 = vmatprep.subr.bf16.mxu0 0
    %681 = vmatpush1.bf16.msra.mxu0 %v623
    %682 = vmatprep.subr.bf16.mxu0 0
    %683 = vmatpush1.bf16.msra.mxu0 %v624
    %684 = vmatprep.subr.bf16.mxu0 0
    %685 = vmatpush1.bf16.msra.mxu0 %v625
    %686 = vmatprep.subr.bf16.mxu0 0
    %687 = vmatpush1.bf16.msra.mxu0 %v626
    %688 = vmatprep.subr.bf16.mxu0 0
    %689 = vmatpush1.bf16.msra.mxu0 0
    %690 = vmatprep.subr.bf16.mxu0 0
    %691 = vmatpush1.bf16.msra.mxu0 0
    %692 = vmatprep.subr.bf16.mxu0 0
    %693 = vmatpush1.bf16.msra.mxu0 0
    %694 = vmatprep.subr.bf16.mxu0 0
    %695 = vmatpush1.bf16.msra.mxu0 0
    %696 = vmatprep.subr.bf16.mxu0 0
    %697 = vmatpush1.bf16.msra.mxu0 0
    %698 = vmatprep.subr.bf16.mxu0 0
    %699 = vmatpush1.bf16.msra.mxu0 0
    %700 = vmatprep.subr.bf16.mxu0 0
    %701 = vmatpush1.bf16.msra.mxu0 0
    %702 = vmatprep.subr.bf16.mxu0 0
    %703 = vmatpush1.bf16.msra.mxu0 0
    %704 = vmatprep.subr.bf16.mxu0 0
    %705 = vmatpush1.bf16.msra.mxu0 0
    %706 = vmatprep.subr.bf16.mxu0 0
    %707 = vmatpush1.bf16.msra.mxu0 0
    %708 = vmatprep.subr.bf16.mxu0 0
    %709 = vmatpush1.bf16.msra.mxu0 0
    %710 = vmatprep.subr.bf16.mxu0 0
    %711 = vmatpush1.bf16.msra.mxu0 0
    %712 = vmatprep.mubr.bf16.mxu0 0
    %713 = vmatmul.mubr.bf16.gmra.mrb[0].mxu0 %v633
    %v714 = vpop.f32.mrb[0].mxu0
    %v715 = vadd.f32 0.0, %v714
    %v716 = vpop.f32.mrb[0].mxu0
    %v717 = vpop.f32.mrb[0].mxu0
    %v718 = vadd.f32 0.0, %v717
    %v719 = vpop.f32.mrb[0].mxu0
    %720 = vmatprep.mubr.bf16.mxu0 0
    %721 = vmatmul.mubr.bf16.gmra.mrb[0].mxu0 %v636
    %v722 = vpop.f32.mrb[0].mxu0
    %v723 = vadd.f32 0.0, %v722
    %v724 = vpop.f32.mrb[0].mxu0
    %v725 = vpop.f32.mrb[0].mxu0
    %v726 = vadd.f32 0.0, %v725
    %v727 = vpop.f32.mrb[0].mxu0
    %728 = vmatprep.mubr.bf16.mxu0 0
    %729 = vmatmul.mubr.bf16.gmra.mrb[0].mxu0 %v639
    %v730 = vpop.f32.mrb[0].mxu0
    %v731 = vadd.f32 0.0, %v730
    %v732 = vpop.f32.mrb[0].mxu0
    %v733 = vpop.f32.mrb[0].mxu0
    %v734 = vadd.f32 0.0, %v733
    %v735 = vpop.f32.mrb[0].mxu0
    %736 = vmatprep.mubr.bf16.mxu0 0
    %737 = vmatmul.mubr.bf16.gmra.mrb[0].mxu0 %v642
    %v738 = vpop.f32.mrb[0].mxu0
    %v739 = vadd.f32 0.0, %v738
    %v740 = vpop.f32.mrb[0].mxu0
    %v741 = vpop.f32.mrb[0].mxu0
    %v742 = vadd.f32 0.0, %v741
    %v743 = vpop.f32.mrb[0].mxu0
    %744 = vmatprep.mubr.bf16.mxu0 0
    %745 = vmatmul.mubr.bf16.gmra.mrb[0].mxu0 %v645
    %v746 = vpop.f32.mrb[0].mxu0
    %v747 = vadd.f32 0.0, %v746
    %v748 = vpop.f32.mrb[0].mxu0
    %v749 = vpop.f32.mrb[0].mxu0
    %v750 = vadd.f32 0.0, %v749
    %v751 = vpop.f32.mrb[0].mxu0
    %752 = vmatprep.mubr.bf16.mxu0 0
    %753 = vmatmul.mubr.bf16.gmra.mrb[0].mxu0 %v648
    %v754 = vpop.f32.mrb[0].mxu0
    %v755 = vadd.f32 0.0, %v754
    %v756 = vpop.f32.mrb[0].mxu0
    %v757 = vpop.f32.mrb[0].mxu0
    %v758 = vadd.f32 0.0, %v757
    %v759 = vpop.f32.mrb[0].mxu0
    %760 = vmatprep.mubr.bf16.mxu0 0
    %761 = vmatmul.mubr.bf16.gmra.mrb[0].mxu0 %v651
    %v762 = vpop.f32.mrb[0].mxu0
    %v763 = vadd.f32 0.0, %v762
    %v764 = vpop.f32.mrb[0].mxu0
    %v765 = vpop.f32.mrb[0].mxu0
    %v766 = vadd.f32 0.0, %v765
    %v767 = vpop.f32.mrb[0].mxu0
    %768 = vmatprep.mubr.bf16.mxu0 0
    %769 = vmatmul.mubr.bf16.gmra.mrb[0].mxu0 %v654
    %v770 = vpop.f32.mrb[0].mxu0
    %v771 = vadd.f32 0.0, %v770
    %v772 = vpop.f32.mrb[0].mxu0
    %v773 = vpop.f32.mrb[0].mxu0
    %v774 = vadd.f32 0.0, %v773
    %v775 = vpop.f32.mrb[0].mxu0
    %776 = vmatprep.mubr.bf16.mxu0 0
    %777 = vmatmul.mubr.bf16.gmra.mrb[0].mxu0 %v657
    %v778 = vpop.f32.mrb[0].mxu0
    %v779 = vadd.f32 0.0, %v778
    %v780 = vpop.f32.mrb[0].mxu0
    %v781 = vpop.f32.mrb[0].mxu0
    %v782 = vadd.f32 0.0, %v781
    %v783 = vpop.f32.mrb[0].mxu0
    %784 = vmatprep.mubr.bf16.mxu0 0
    %785 = vmatmul.mubr.bf16.gmra.mrb[0].mxu0 %v660
    %v786 = vpop.f32.mrb[0].mxu0
    %v787 = vadd.f32 0.0, %v786
    %v788 = vpop.f32.mrb[0].mxu0
    %v789 = vpop.f32.mrb[0].mxu0
    %v790 = vadd.f32 0.0, %v789
    %v791 = vpop.f32.mrb[0].mxu0
    %792 = vmatprep.mubr.bf16.mxu0 0
    %793 = vmatmul.mubr.bf16.gmra.mrb[0].mxu0 %v663
    %v794 = vpop.f32.mrb[0].mxu0
    %v795 = vadd.f32 0.0, %v794
    %v796 = vpop.f32.mrb[0].mxu0
    %v797 = vpop.f32.mrb[0].mxu0
    %v798 = vadd.f32 0.0, %v797
    %v799 = vpop.f32.mrb[0].mxu0
    %800 = vmatprep.mubr.bf16.mxu0 0
    %801 = vmatmul.mubr.bf16.gmra.mrb[0].mxu0 %v666
    %v802 = vpop.f32.mrb[0].mxu0
    %v803 = vadd.f32 0.0, %v802
    %v804 = vpop.f32.mrb[0].mxu0
    %v805 = vpop.f32.mrb[0].mxu0
    %v806 = vadd.f32 0.0, %v805
    %v807 = vpop.f32.mrb[0].mxu0
    %808 = vmatprep.mubr.bf16.mxu0 0
    %809 = vmatmul.mubr.bf16.gmra.mrb[0].mxu0 %v669
    %v810 = vpop.f32.mrb[0].mxu0
    %v811 = vadd.f32 0.0, %v810
    %v812 = vpop.f32.mrb[0].mxu0
    %v813 = vpop.f32.mrb[0].mxu0
    %v814 = vadd.f32 0.0, %v813
    %v815 = vpop.f32.mrb[0].mxu0
    %816 = vmatprep.mubr.bf16.mxu0 0
    %817 = vmatmul.mubr.bf16.gmra.mrb[0].mxu0 %v672
    %v818 = vpop.f32.mrb[0].mxu0
    %v819 = vadd.f32 0.0, %v818
    %v820 = vpop.f32.mrb[0].mxu0
    %v821 = vpop.f32.mrb[0].mxu0
    %v822 = vadd.f32 0.0, %v821
    %v823 = vpop.f32.mrb[0].mxu0
    %824 = vmatprep.mubr.bf16.mxu0 0
    %825 = vmatmul.mubr.bf16.gmra.mrb[0].mxu0 %v675
    %v826 = vpop.f32.mrb[0].mxu0
    %v827 = vadd.f32 0.0, %v826
    %v828 = vpop.f32.mrb[0].mxu0
    %v829 = vpop.f32.mrb[0].mxu0
    %v830 = vadd.f32 0.0, %v829
    %v831 = vpop.f32.mrb[0].mxu0
    %832 = vmatprep.mubr.bf16.mxu0 0
    %833 = vmatmul.mubr.bf16.gmra.mrb[0].mxu0 %v678
    %v834 = vpop.f32.mrb[0].mxu0
    %v835 = vadd.f32 0.0, %v834
    %v836 = vpop.f32.mrb[0].mxu0
    %v837 = vpop.f32.mrb[0].mxu0
    %v838 = vadd.f32 0.0, %v837
    %v839 = vpop.f32.mrb[0].mxu0
    %840 = vdwg.mxu0
    %v841 = vld [vmem:[#allocation8] sm:$0x1]
    %v842 = vld [vmem:[#allocation10] sm:$0x1]
    %v843 = vadd.f32 %v715, %v718
    %v844 = vadd.f32 %v843, %v723
    %v845 = vadd.f32 %v844, %v726
    %v846 = vadd.f32 %v845, %v731
    %v847 = vadd.f32 %v846, %v734
    %v848 = vadd.f32 %v847, %v739
    %v849 = vadd.f32 %v848, %v742
    %v850 = vadd.f32 %v849, %v747
    %v851 = vadd.f32 %v850, %v750
    %v852 = vadd.f32 %v851, %v755
    %v853 = vadd.f32 %v852, %v758
    %v854 = vadd.f32 %v853, %v763
    %v855 = vadd.f32 %v854, %v766
    %v856 = vadd.f32 %v855, %v771
    %v857 = vadd.f32 %v856, %v774
    %v858 = vadd.f32 %v857, %v779
    %v859 = vadd.f32 %v858, %v782
    %v860 = vadd.f32 %v859, %v787
    %v861 = vadd.f32 %v860, %v790
    %v862 = vadd.f32 %v861, %v795
    %v863 = vadd.f32 %v862, %v798
    %v864 = vadd.f32 %v863, %v803
    %v865 = vadd.f32 %v864, %v806
    %v866 = vadd.f32 %v865, %v811
    %v867 = vadd.f32 %v866, %v814
    %v868 = vadd.f32 %v867, %v819
    %v869 = vadd.f32 %v868, %v822
    %v870 = vadd.f32 %v869, %v827
    %v871 = vadd.f32 %v870, %v830
    %v872 = vadd.f32 %v871, %v835
    %v873 = vadd.f32 %v872, %v838
    %v874 = vrot.slane %v873, 4
    %v875 = vadd.f32 %v873, %v874
    %v876 = vrot.slane %v875, 2
    %v877 = vadd.f32 %v875, %v876
    %v878 = vrot.slane %v877, 1
    %v879 = vadd.f32 %v877, %v878
    %v880 = vrcp.pop 256.0
    %v881 = vmul.f32 %v879, %v880
    %v882 = vsub.f32 %v715, %v881
    %v883 = vsub.f32 %v718, %v881
    %v884 = vsub.f32 %v723, %v881
    %v885 = vsub.f32 %v726, %v881
    %v886 = vsub.f32 %v731, %v881
    %v887 = vsub.f32 %v734, %v881
    %v888 = vsub.f32 %v739, %v881
    %v889 = vsub.f32 %v742, %v881
    %v890 = vsub.f32 %v747, %v881
    %v891 = vsub.f32 %v750, %v881
    %v892 = vsub.f32 %v755, %v881
    %v893 = vsub.f32 %v758, %v881
    %v894 = vsub.f32 %v763, %v881
    %v895 = vsub.f32 %v766, %v881
    %v896 = vsub.f32 %v771, %v881
    %v897 = vsub.f32 %v774, %v881
    %v898 = vsub.f32 %v779, %v881
    %v899 = vsub.f32 %v782, %v881
    %v900 = vsub.f32 %v787, %v881
    %v901 = vsub.f32 %v790, %v881
    %v902 = vsub.f32 %v795, %v881
    %v903 = vsub.f32 %v798, %v881
    %v904 = vsub.f32 %v803, %v881
    %v905 = vsub.f32 %v806, %v881
    %v906 = vsub.f32 %v811, %v881
    %v907 = vsub.f32 %v814, %v881
    %v908 = vsub.f32 %v819, %v881
    %v909 = vsub.f32 %v822, %v881
    %v910 = vsub.f32 %v827, %v881
    %v911 = vsub.f32 %v830, %v881
    %v912 = vsub.f32 %v835, %v881
    %v913 = vsub.f32 %v838, %v881
    %v914 = vmul.f32 %v882, %v882
    %v915 = vmul.f32 %v883, %v883
    %v916 = vmul.f32 %v884, %v884
    %v917 = vmul.f32 %v885, %v885
    %v918 = vmul.f32 %v886, %v886
    %v919 = vmul.f32 %v887, %v887
    %v920 = vmul.f32 %v888, %v888
    %v921 = vmul.f32 %v889, %v889
    %v922 = vmul.f32 %v890, %v890
    %v923 = vmul.f32 %v891, %v891
    %v924 = vmul.f32 %v892, %v892
    %v925 = vmul.f32 %v893, %v893
    %v926 = vmul.f32 %v894, %v894
    %v927 = vmul.f32 %v895, %v895
    %v928 = vmul.f32 %v896, %v896
    %v929 = vmul.f32 %v897, %v897
    %v930 = vmul.f32 %v898, %v898
    %v931 = vmul.f32 %v899, %v899
    %v932 = vmul.f32 %v900, %v900
    %v933 = vmul.f32 %v901, %v901
    %v934 = vmul.f32 %v902, %v902
    %v935 = vmul.f32 %v903, %v903
    %v936 = vmul.f32 %v904, %v904
    %v937 = vmul.f32 %v905, %v905
    %v938 = vmul.f32 %v906, %v906
    %v939 = vmul.f32 %v907, %v907
    %v940 = vmul.f32 %v908, %v908
    %v941 = vmul.f32 %v909, %v909
    %v942 = vmul.f32 %v910, %v910
    %v943 = vmul.f32 %v911, %v911
    %v944 = vmul.f32 %v912, %v912
    %v945 = vmul.f32 %v913, %v913
    %v946 = vadd.f32 %v914, %v915
    %v947 = vadd.f32 %v946, %v916
    %v948 = vadd.f32 %v947, %v917
    %v949 = vadd.f32 %v948, %v918
    %v950 = vadd.f32 %v949, %v919
    %v951 = vadd.f32 %v950, %v920
    %v952 = vadd.f32 %v951, %v921
    %v953 = vadd.f32 %v952, %v922
    %v954 = vadd.f32 %v953, %v923
    %v955 = vadd.f32 %v954, %v924
    %v956 = vadd.f32 %v955, %v925
    %v957 = vadd.f32 %v956, %v926
    %v958 = vadd.f32 %v957, %v927
    %v959 = vadd.f32 %v958, %v928
    %v960 = vadd.f32 %v959, %v929
    %v961 = vadd.f32 %v960, %v930
    %v962 = vadd.f32 %v961, %v931
    %v963 = vadd.f32 %v962, %v932
    %v964 = vadd.f32 %v963, %v933
    %v965 = vadd.f32 %v964, %v934
    %v966 = vadd.f32 %v965, %v935
    %v967 = vadd.f32 %v966, %v936
    %v968 = vadd.f32 %v967, %v937
    %v969 = vadd.f32 %v968, %v938
    %v970 = vadd.f32 %v969, %v939
    %v971 = vadd.f32 %v970, %v940
    %v972 = vadd.f32 %v971, %v941
    %v973 = vadd.f32 %v972, %v942
    %v974 = vadd.f32 %v973, %v943
    %v975 = vadd.f32 %v974, %v944
    %v976 = vadd.f32 %v975, %v945
    %v977 = vrot.slane %v976, 4
    %v978 = vadd.f32 %v976, %v977
    %v979 = vrot.slane %v978, 2
    %v980 = vadd.f32 %v978, %v979
    %v981 = vrot.slane %v980, 1
    %v982 = vadd.f32 %v980, %v981
    %v983 = vmul.f32 %v982, %v880
    %v984 = vadd.f32 %v983, 1e-05
    %v985 = vrsqrt.pop %v984
    %v986 = vmul.f32 %v841, %v985
    %v988 = vlaneseq
    %v989 = vshrl.u32 %v988, 7
    %v990 = vsub.s32 0, %v989
    %v991 = vrot.slane %v986, %v990
    %v993 = vmul.f32 %v882, %v991
    %v994 = vmul.f32 %v883, %v991
    %v995 = vmul.f32 %v884, %v991
    %v996 = vmul.f32 %v885, %v991
    %v997 = vmul.f32 %v886, %v991
    %v998 = vmul.f32 %v887, %v991
    %v999 = vmul.f32 %v888, %v991
    %v1000 = vmul.f32 %v889, %v991
    %v1001 = vmul.f32 %v890, %v991
    %v1002 = vmul.f32 %v891, %v991
    %v1003 = vmul.f32 %v892, %v991
    %v1004 = vmul.f32 %v893, %v991
    %v1005 = vmul.f32 %v894, %v991
    %v1006 = vmul.f32 %v895, %v991
    %v1007 = vmul.f32 %v896, %v991
    %v1008 = vmul.f32 %v897, %v991
    %v1009 = vmul.f32 %v898, %v991
    %v1010 = vmul.f32 %v899, %v991
    %v1011 = vmul.f32 %v900, %v991
    %v1012 = vmul.f32 %v901, %v991
    %v1013 = vmul.f32 %v902, %v991
    %v1014 = vmul.f32 %v903, %v991
    %v1015 = vmul.f32 %v904, %v991
    %v1016 = vmul.f32 %v905, %v991
    %v1017 = vmul.f32 %v906, %v991
    %v1018 = vmul.f32 %v907, %v991
    %v1019 = vmul.f32 %v908, %v991
    %v1020 = vmul.f32 %v909, %v991
    %v1021 = vmul.f32 %v910, %v991
    %v1022 = vmul.f32 %v911, %v991
    %v1023 = vmul.f32 %v912, %v991
    %v1024 = vmul.f32 %v913, %v991
    %v1026 = vlaneseq
    %v1027 = vshrl.u32 %v1026, 7
    %v1028 = vsub.s32 0, %v1027
    %v1029 = vrot.slane %v842, %v1028
    %v1031 = vadd.f32 %v993, %v1029
    %v1032 = vadd.f32 %v994, %v1029
    %v1033 = vadd.f32 %v995, %v1029
    %v1034 = vadd.f32 %v996, %v1029
    %v1035 = vadd.f32 %v997, %v1029
    %v1036 = vadd.f32 %v998, %v1029
    %v1037 = vadd.f32 %v999, %v1029
    %v1038 = vadd.f32 %v1000, %v1029
    %v1039 = vadd.f32 %v1001, %v1029
    %v1040 = vadd.f32 %v1002, %v1029
    %v1041 = vadd.f32 %v1003, %v1029
    %v1042 = vadd.f32 %v1004, %v1029
    %v1043 = vadd.f32 %v1005, %v1029
    %v1044 = vadd.f32 %v1006, %v1029
    %v1045 = vadd.f32 %v1007, %v1029
    %v1046 = vadd.f32 %v1008, %v1029
    %v1047 = vadd.f32 %v1009, %v1029
    %v1048 = vadd.f32 %v1010, %v1029
    %v1049 = vadd.f32 %v1011, %v1029
    %v1050 = vadd.f32 %v1012, %v1029
    %v1051 = vadd.f32 %v1013, %v1029
    %v1052 = vadd.f32 %v1014, %v1029
    %v1053 = vadd.f32 %v1015, %v1029
    %v1054 = vadd.f32 %v1016, %v1029
    %v1055 = vadd.f32 %v1017, %v1029
    %v1056 = vadd.f32 %v1018, %v1029
    %v1057 = vadd.f32 %v1019, %v1029
    %v1058 = vadd.f32 %v1020, %v1029
    %v1059 = vadd.f32 %v1021, %v1029
    %v1060 = vadd.f32 %v1022, %v1029
    %v1061 = vadd.f32 %v1023, %v1029
    %v1062 = vadd.f32 %v1024, %v1029
    %vm1063 = vcmp.ge.f32.partialorder %v1031, 0.0
    %vm1064 = vcmp.ge.f32.partialorder %v1032, 0.0
    %vm1065 = vcmp.ge.f32.partialorder %v1033, 0.0
    %vm1066 = vcmp.ge.f32.partialorder %v1034, 0.0
    %vm1067 = vcmp.ge.f32.partialorder %v1035, 0.0
    %vm1068 = vcmp.ge.f32.partialorder %v1036, 0.0
    %vm1069 = vcmp.ge.f32.partialorder %v1037, 0.0
    %vm1070 = vcmp.ge.f32.partialorder %v1038, 0.0
    %vm1071 = vcmp.ge.f32.partialorder %v1039, 0.0
    %vm1072 = vcmp.ge.f32.partialorder %v1040, 0.0
    %vm1073 = vcmp.ge.f32.partialorder %v1041, 0.0
    %vm1074 = vcmp.ge.f32.partialorder %v1042, 0.0
    %vm1075 = vcmp.ge.f32.partialorder %v1043, 0.0
    %vm1076 = vcmp.ge.f32.partialorder %v1044, 0.0
    %vm1077 = vcmp.ge.f32.partialorder %v1045, 0.0
    %vm1078 = vcmp.ge.f32.partialorder %v1046, 0.0
    %vm1079 = vcmp.ge.f32.partialorder %v1047, 0.0
    %vm1080 = vcmp.ge.f32.partialorder %v1048, 0.0
    %vm1081 = vcmp.ge.f32.partialorder %v1049, 0.0
    %vm1082 = vcmp.ge.f32.partialorder %v1050, 0.0
    %vm1083 = vcmp.ge.f32.partialorder %v1051, 0.0
    %vm1084 = vcmp.ge.f32.partialorder %v1052, 0.0
    %vm1085 = vcmp.ge.f32.partialorder %v1053, 0.0
    %vm1086 = vcmp.ge.f32.partialorder %v1054, 0.0
    %vm1087 = vcmp.ge.f32.partialorder %v1055, 0.0
    %vm1088 = vcmp.ge.f32.partialorder %v1056, 0.0
    %vm1089 = vcmp.ge.f32.partialorder %v1057, 0.0
    %vm1090 = vcmp.ge.f32.partialorder %v1058, 0.0
    %vm1091 = vcmp.ge.f32.partialorder %v1059, 0.0
    %vm1092 = vcmp.ge.f32.partialorder %v1060, 0.0
    %vm1093 = vcmp.ge.f32.partialorder %v1061, 0.0
    %vm1094 = vcmp.ge.f32.partialorder %v1062, 0.0
    %v1095 = vmul.f32 %v1031, 0.2
    %v1096 = vmul.f32 %v1032, 0.2
    %v1097 = vmul.f32 %v1033, 0.2
    %v1098 = vmul.f32 %v1034, 0.2
    %v1099 = vmul.f32 %v1035, 0.2
    %v1100 = vmul.f32 %v1036, 0.2
    %v1101 = vmul.f32 %v1037, 0.2
    %v1102 = vmul.f32 %v1038, 0.2
    %v1103 = vmul.f32 %v1039, 0.2
    %v1104 = vmul.f32 %v1040, 0.2
    %v1105 = vmul.f32 %v1041, 0.2
    %v1106 = vmul.f32 %v1042, 0.2
    %v1107 = vmul.f32 %v1043, 0.2
    %v1108 = vmul.f32 %v1044, 0.2
    %v1109 = vmul.f32 %v1045, 0.2
    %v1110 = vmul.f32 %v1046, 0.2
    %v1111 = vmul.f32 %v1047, 0.2
    %v1112 = vmul.f32 %v1048, 0.2
    %v1113 = vmul.f32 %v1049, 0.2
    %v1114 = vmul.f32 %v1050, 0.2
    %v1115 = vmul.f32 %v1051, 0.2
    %v1116 = vmul.f32 %v1052, 0.2
    %v1117 = vmul.f32 %v1053, 0.2
    %v1118 = vmul.f32 %v1054, 0.2
    %v1119 = vmul.f32 %v1055, 0.2
    %v1120 = vmul.f32 %v1056, 0.2
    %v1121 = vmul.f32 %v1057, 0.2
    %v1122 = vmul.f32 %v1058, 0.2
    %v1123 = vmul.f32 %v1059, 0.2
    %v1124 = vmul.f32 %v1060, 0.2
    %v1125 = vmul.f32 %v1061, 0.2
    %v1126 = vmul.f32 %v1062, 0.2
    %v1127 = vsel %vm1063, %v1031, %v1095
    %v1128 = vsel %vm1064, %v1032, %v1096
    %v1129 = vsel %vm1065, %v1033, %v1097
    %v1130 = vsel %vm1066, %v1034, %v1098
    %v1131 = vsel %vm1067, %v1035, %v1099
    %v1132 = vsel %vm1068, %v1036, %v1100
    %v1133 = vsel %vm1069, %v1037, %v1101
    %v1134 = vsel %vm1070, %v1038, %v1102
    %v1135 = vsel %vm1071, %v1039, %v1103
    %v1136 = vsel %vm1072, %v1040, %v1104
    %v1137 = vsel %vm1073, %v1041, %v1105
    %v1138 = vsel %vm1074, %v1042, %v1106
    %v1139 = vsel %vm1075, %v1043, %v1107
    %v1140 = vsel %vm1076, %v1044, %v1108
    %v1141 = vsel %vm1077, %v1045, %v1109
    %v1142 = vsel %vm1078, %v1046, %v1110
    %v1143 = vsel %vm1079, %v1047, %v1111
    %v1144 = vsel %vm1080, %v1048, %v1112
    %v1145 = vsel %vm1081, %v1049, %v1113
    %v1146 = vsel %vm1082, %v1050, %v1114
    %v1147 = vsel %vm1083, %v1051, %v1115
    %v1148 = vsel %vm1084, %v1052, %v1116
    %v1149 = vsel %vm1085, %v1053, %v1117
    %v1150 = vsel %vm1086, %v1054, %v1118
    %v1151 = vsel %vm1087, %v1055, %v1119
    %v1152 = vsel %vm1088, %v1056, %v1120
    %v1153 = vsel %vm1089, %v1057, %v1121
    %v1154 = vsel %vm1090, %v1058, %v1122
    %v1155 = vsel %vm1091, %v1059, %v1123
    %v1156 = vsel %vm1092, %v1060, %v1124
    %v1157 = vsel %vm1093, %v1061, %v1125
    %v1158 = vsel %vm1094, %v1062, %v1126
    %v1159 = vpack.c.bf16 %v1128, %v1127
    %v1160 = vpack.c.bf16 %v1130, %v1129
    %v1161 = vpack.c.bf16 %v1132, %v1131
    %v1162 = vpack.c.bf16 %v1134, %v1133
    %v1163 = vpack.c.bf16 %v1136, %v1135
    %v1164 = vpack.c.bf16 %v1138, %v1137
    %v1165 = vpack.c.bf16 %v1140, %v1139
    %v1166 = vpack.c.bf16 %v1142, %v1141
    %v1167 = vpack.c.bf16 %v1144, %v1143
    %v1168 = vpack.c.bf16 %v1146, %v1145
    %v1169 = vpack.c.bf16 %v1148, %v1147
    %v1170 = vpack.c.bf16 %v1150, %v1149
    %v1171 = vpack.c.bf16 %v1152, %v1151
    %v1172 = vpack.c.bf16 %v1154, %v1153
    %v1173 = vpack.c.bf16 %v1156, %v1155
    %v1174 = vpack.c.bf16 %v1158, %v1157
    %v1175 = vld [vmem:[#allocation11] sm:$0xff]
    %v1176 = vld [vmem:[#allocation11 + $0x8] sm:$0xff]
    %v1177 = vld [vmem:[#allocation11 + $0x10] sm:$0xff]
    %v1178 = vld [vmem:[#allocation11 + $0x18] sm:$0xff]
    %v1179 = vld [vmem:[#allocation11 + $0x20] sm:$0xff]
    %v1180 = vld [vmem:[#allocation11 + $0x28] sm:$0xff]
    %v1181 = vld [vmem:[#allocation11 + $0x30] sm:$0xff]
    %v1182 = vld [vmem:[#allocation11 + $0x38] sm:$0xff]
    %v1183 = vld [vmem:[#allocation11 + $0x40] sm:$0xff]
    %v1184 = vld [vmem:[#allocation11 + $0x48] sm:$0xff]
    %v1185 = vld [vmem:[#allocation11 + $0x50] sm:$0xff]
    %v1186 = vld [vmem:[#allocation11 + $0x58] sm:$0xff]
    %v1187 = vld [vmem:[#allocation11 + $0x60] sm:$0xff]
    %v1188 = vld [vmem:[#allocation11 + $0x68] sm:$0xff]
    %v1189 = vld [vmem:[#allocation11 + $0x70] sm:$0xff]
    %v1190 = vld [vmem:[#allocation11 + $0x78] sm:$0xff]
    %v1207 = vunpack.c.l.b16 %v1175
    %v1208 = vunpack.c.h.b16 %v1175
    %v1209 = vunpack.c.l.b16 %v1176
    %v1210 = vunpack.c.h.b16 %v1176
    %v1211 = vunpack.c.l.b16 %v1177
    %v1212 = vunpack.c.h.b16 %v1177
    %v1213 = vunpack.c.l.b16 %v1178
    %v1214 = vunpack.c.h.b16 %v1178
    %v1215 = vunpack.c.l.b16 %v1179
    %v1216 = vunpack.c.h.b16 %v1179
    %v1217 = vunpack.c.l.b16 %v1180
    %v1218 = vunpack.c.h.b16 %v1180
    %v1219 = vunpack.c.l.b16 %v1181
    %v1220 = vunpack.c.h.b16 %v1181
    %v1221 = vunpack.c.l.b16 %v1182
    %v1222 = vunpack.c.h.b16 %v1182
    %v1223 = vunpack.c.l.b16 %v1183
    %v1224 = vunpack.c.h.b16 %v1183
    %v1225 = vunpack.c.l.b16 %v1184
    %v1226 = vunpack.c.h.b16 %v1184
    %v1227 = vunpack.c.l.b16 %v1185
    %v1228 = vunpack.c.h.b16 %v1185
    %v1229 = vunpack.c.l.b16 %v1186
    %v1230 = vunpack.c.h.b16 %v1186
    %v1231 = vunpack.c.l.b16 %v1187
    %v1232 = vunpack.c.h.b16 %v1187
    %v1233 = vunpack.c.l.b16 %v1188
    %v1234 = vunpack.c.h.b16 %v1188
    %v1235 = vunpack.c.l.b16 %v1189
    %v1236 = vunpack.c.h.b16 %v1189
    %v1237 = vunpack.c.l.b16 %v1190
    %v1238 = vunpack.c.h.b16 %v1190
    %v1239 = vpack.c.b16 %v1209, %v1207
    %v1240 = vpack.c.b16 %v1210, %v1208
    %v1241 = vpack.c.b16 %v1213, %v1211
    %v1242 = vpack.c.b16 %v1214, %v1212
    %v1243 = vpack.c.b16 %v1217, %v1215
    %v1244 = vpack.c.b16 %v1218, %v1216
    %v1245 = vpack.c.b16 %v1221, %v1219
    %v1246 = vpack.c.b16 %v1222, %v1220
    %v1247 = vpack.c.b16 %v1225, %v1223
    %v1248 = vpack.c.b16 %v1226, %v1224
    %v1249 = vpack.c.b16 %v1229, %v1227
    %v1250 = vpack.c.b16 %v1230, %v1228
    %v1251 = vpack.c.b16 %v1233, %v1231
    %v1252 = vpack.c.b16 %v1234, %v1232
    %v1253 = vpack.c.b16 %v1237, %v1235
    %v1254 = vpack.c.b16 %v1238, %v1236
    %1271 = vmatprep.subr.bf16.mxu0 %v1240
    %1272 = vmatpush1.bf16.msra.mxu0 %v1239
    %1273 = vmatprep.subr.bf16.mxu0 %v1242
    %1274 = vmatpush1.bf16.msra.mxu0 %v1241
    %1275 = vmatprep.subr.bf16.mxu0 %v1244
    %1276 = vmatpush1.bf16.msra.mxu0 %v1243
    %1277 = vmatprep.subr.bf16.mxu0 %v1246
    %1278 = vmatpush1.bf16.msra.mxu0 %v1245
    %1279 = vmatprep.subr.bf16.mxu0 %v1248
    %1280 = vmatpush1.bf16.msra.mxu0 %v1247
    %1281 = vmatprep.subr.bf16.mxu0 %v1250
    %1282 = vmatpush1.bf16.msra.mxu0 %v1249
    %1283 = vmatprep.subr.bf16.mxu0 %v1252
    %1284 = vmatpush1.bf16.msra.mxu0 %v1251
    %1285 = vmatprep.subr.bf16.mxu0 %v1254
    %1286 = vmatpush1.bf16.msra.mxu0 %v1253
    %1287 = vmatprep.subr.bf16.mxu0 0
    %1288 = vmatpush1.bf16.msra.mxu0 0
    %1289 = vmatprep.subr.bf16.mxu0 0
    %1290 = vmatpush1.bf16.msra.mxu0 0
    %1291 = vmatprep.subr.bf16.mxu0 0
    %1292 = vmatpush1.bf16.msra.mxu0 0
    %1293 = vmatprep.subr.bf16.mxu0 0
    %1294 = vmatpush1.bf16.msra.mxu0 0
    %1295 = vmatprep.subr.bf16.mxu0 0
    %1296 = vmatpush1.bf16.msra.mxu0 0
    %1297 = vmatprep.subr.bf16.mxu0 0
    %1298 = vmatpush1.bf16.msra.mxu0 0
    %1299 = vmatprep.subr.bf16.mxu0 0
    %1300 = vmatpush1.bf16.msra.mxu0 0
    %1301 = vmatprep.subr.bf16.mxu0 0
    %1302 = vmatpush1.bf16.msra.mxu0 0
    %1303 = vmatprep.mubr.bf16.mxu0 0
    %1304 = vmatmul.mubr.bf16.gmra.mrb[0].mxu0 %v1159
    %v1305 = vpop.f32.mrb[0].mxu0
    %v1306 = vadd.f32 0.0, %v1305
    %v1307 = vpop.f32.mrb[0].mxu0
    %v1308 = vadd.f32 0.0, %v1307
    %v1309 = vpop.f32.mrb[0].mxu0
    %v1310 = vadd.f32 0.0, %v1309
    %v1311 = vpop.f32.mrb[0].mxu0
    %v1312 = vadd.f32 0.0, %v1311
    %1313 = vmatprep.mubr.bf16.mxu0 0
    %1314 = vmatmul.mubr.bf16.gmra.mrb[0].mxu0 %v1160
    %v1315 = vpop.f32.mrb[0].mxu0
    %v1316 = vadd.f32 0.0, %v1315
    %v1317 = vpop.f32.mrb[0].mxu0
    %v1318 = vadd.f32 0.0, %v1317
    %v1319 = vpop.f32.mrb[0].mxu0
    %v1320 = vadd.f32 0.0, %v1319
    %v1321 = vpop.f32.mrb[0].mxu0
    %v1322 = vadd.f32 0.0, %v1321
    %1323 = vmatprep.mubr.bf16.mxu0 0
    %1324 = vmatmul.mubr.bf16.gmra.mrb[0].mxu0 %v1161
    %v1325 = vpop.f32.mrb[0].mxu0
    %v1326 = vadd.f32 0.0, %v1325
    %v1327 = vpop.f32.mrb[0].mxu0
    %v1328 = vadd.f32 0.0, %v1327
    %v1329 = vpop.f32.mrb[0].mxu0
    %v1330 = vadd.f32 0.0, %v1329
    %v1331 = vpop.f32.mrb[0].mxu0
    %v1332 = vadd.f32 0.0, %v1331
    %1333 = vmatprep.mubr.bf16.mxu0 0
    %1334 = vmatmul.mubr.bf16.gmra.mrb[0].mxu0 %v1162
    %v1335 = vpop.f32.mrb[0].mxu0
    %v1336 = vadd.f32 0.0, %v1335
    %v1337 = vpop.f32.mrb[0].mxu0
    %v1338 = vadd.f32 0.0, %v1337
    %v1339 = vpop.f32.mrb[0].mxu0
    %v1340 = vadd.f32 0.0, %v1339
    %v1341 = vpop.f32.mrb[0].mxu0
    %v1342 = vadd.f32 0.0, %v1341
    %1343 = vmatprep.mubr.bf16.mxu0 0
    %1344 = vmatmul.mubr.bf16.gmra.mrb[0].mxu0 %v1163
    %v1345 = vpop.f32.mrb[0].mxu0
    %v1346 = vadd.f32 0.0, %v1345
    %v1347 = vpop.f32.mrb[0].mxu0
    %v1348 = vadd.f32 0.0, %v1347
    %v1349 = vpop.f32.mrb[0].mxu0
    %v1350 = vadd.f32 0.0, %v1349
    %v1351 = vpop.f32.mrb[0].mxu0
    %v1352 = vadd.f32 0.0, %v1351
    %1353 = vmatprep.mubr.bf16.mxu0 0
    %1354 = vmatmul.mubr.bf16.gmra.mrb[0].mxu0 %v1164
    %v1355 = vpop.f32.mrb[0].mxu0
    %v1356 = vadd.f32 0.0, %v1355
    %v1357 = vpop.f32.mrb[0].mxu0
    %v1358 = vadd.f32 0.0, %v1357
    %v1359 = vpop.f32.mrb[0].mxu0
    %v1360 = vadd.f32 0.0, %v1359
    %v1361 = vpop.f32.mrb[0].mxu0
    %v1362 = vadd.f32 0.0, %v1361
    %1363 = vmatprep.mubr.bf16.mxu0 0
    %1364 = vmatmul.mubr.bf16.gmra.mrb[0].mxu0 %v1165
    %v1365 = vpop.f32.mrb[0].mxu0
    %v1366 = vadd.f32 0.0, %v1365
    %v1367 = vpop.f32.mrb[0].mxu0
    %v1368 = vadd.f32 0.0, %v1367
    %v1369 = vpop.f32.mrb[0].mxu0
    %v1370 = vadd.f32 0.0, %v1369
    %v1371 = vpop.f32.mrb[0].mxu0
    %v1372 = vadd.f32 0.0, %v1371
    %1373 = vmatprep.mubr.bf16.mxu0 0
    %1374 = vmatmul.mubr.bf16.gmra.mrb[0].mxu0 %v1166
    %v1375 = vpop.f32.mrb[0].mxu0
    %v1376 = vadd.f32 0.0, %v1375
    %v1377 = vpop.f32.mrb[0].mxu0
    %v1378 = vadd.f32 0.0, %v1377
    %v1379 = vpop.f32.mrb[0].mxu0
    %v1380 = vadd.f32 0.0, %v1379
    %v1381 = vpop.f32.mrb[0].mxu0
    %v1382 = vadd.f32 0.0, %v1381
    %1383 = vmatprep.mubr.bf16.mxu0 0
    %1384 = vmatmul.mubr.bf16.gmra.mrb[0].mxu0 %v1167
    %v1385 = vpop.f32.mrb[0].mxu0
    %v1386 = vadd.f32 0.0, %v1385
    %v1387 = vpop.f32.mrb[0].mxu0
    %v1388 = vadd.f32 0.0, %v1387
    %v1389 = vpop.f32.mrb[0].mxu0
    %v1390 = vadd.f32 0.0, %v1389
    %v1391 = vpop.f32.mrb[0].mxu0
    %v1392 = vadd.f32 0.0, %v1391
    %1393 = vmatprep.mubr.bf16.mxu0 0
    %1394 = vmatmul.mubr.bf16.gmra.mrb[0].mxu0 %v1168
    %v1395 = vpop.f32.mrb[0].mxu0
    %v1396 = vadd.f32 0.0, %v1395
    %v1397 = vpop.f32.mrb[0].mxu0
    %v1398 = vadd.f32 0.0, %v1397
    %v1399 = vpop.f32.mrb[0].mxu0
    %v1400 = vadd.f32 0.0, %v1399
    %v1401 = vpop.f32.mrb[0].mxu0
    %v1402 = vadd.f32 0.0, %v1401
    %1403 = vmatprep.mubr.bf16.mxu0 0
    %1404 = vmatmul.mubr.bf16.gmra.mrb[0].mxu0 %v1169
    %v1405 = vpop.f32.mrb[0].mxu0
    %v1406 = vadd.f32 0.0, %v1405
    %v1407 = vpop.f32.mrb[0].mxu0
    %v1408 = vadd.f32 0.0, %v1407
    %v1409 = vpop.f32.mrb[0].mxu0
    %v1410 = vadd.f32 0.0, %v1409
    %v1411 = vpop.f32.mrb[0].mxu0
    %v1412 = vadd.f32 0.0, %v1411
    %1413 = vmatprep.mubr.bf16.mxu0 0
    %1414 = vmatmul.mubr.bf16.gmra.mrb[0].mxu0 %v1170
    %v1415 = vpop.f32.mrb[0].mxu0
    %v1416 = vadd.f32 0.0, %v1415
    %v1417 = vpop.f32.mrb[0].mxu0
    %v1418 = vadd.f32 0.0, %v1417
    %v1419 = vpop.f32.mrb[0].mxu0
    %v1420 = vadd.f32 0.0, %v1419
    %v1421 = vpop.f32.mrb[0].mxu0
    %v1422 = vadd.f32 0.0, %v1421
    %1423 = vmatprep.mubr.bf16.mxu0 0
    %1424 = vmatmul.mubr.bf16.gmra.mrb[0].mxu0 %v1171
    %v1425 = vpop.f32.mrb[0].mxu0
    %v1426 = vadd.f32 0.0, %v1425
    %v1427 = vpop.f32.mrb[0].mxu0
    %v1428 = vadd.f32 0.0, %v1427
    %v1429 = vpop.f32.mrb[0].mxu0
    %v1430 = vadd.f32 0.0, %v1429
    %v1431 = vpop.f32.mrb[0].mxu0
    %v1432 = vadd.f32 0.0, %v1431
    %1433 = vmatprep.mubr.bf16.mxu0 0
    %1434 = vmatmul.mubr.bf16.gmra.mrb[0].mxu0 %v1172
    %v1435 = vpop.f32.mrb[0].mxu0
    %v1436 = vadd.f32 0.0, %v1435
    %v1437 = vpop.f32.mrb[0].mxu0
    %v1438 = vadd.f32 0.0, %v1437
    %v1439 = vpop.f32.mrb[0].mxu0
    %v1440 = vadd.f32 0.0, %v1439
    %v1441 = vpop.f32.mrb[0].mxu0
    %v1442 = vadd.f32 0.0, %v1441
    %1443 = vmatprep.mubr.bf16.mxu0 0
    %1444 = vmatmul.mubr.bf16.gmra.mrb[0].mxu0 %v1173
    %v1445 = vpop.f32.mrb[0].mxu0
    %v1446 = vadd.f32 0.0, %v1445
    %v1447 = vpop.f32.mrb[0].mxu0
    %v1448 = vadd.f32 0.0, %v1447
    %v1449 = vpop.f32.mrb[0].mxu0
    %v1450 = vadd.f32 0.0, %v1449
    %v1451 = vpop.f32.mrb[0].mxu0
    %v1452 = vadd.f32 0.0, %v1451
    %1453 = vmatprep.mubr.bf16.mxu0 0
    %1454 = vmatmul.mubr.bf16.gmra.mrb[0].mxu0 %v1174
    %v1455 = vpop.f32.mrb[0].mxu0
    %v1456 = vadd.f32 0.0, %v1455
    %v1457 = vpop.f32.mrb[0].mxu0
    %v1458 = vadd.f32 0.0, %v1457
    %v1459 = vpop.f32.mrb[0].mxu0
    %v1460 = vadd.f32 0.0, %v1459
    %v1461 = vpop.f32.mrb[0].mxu0
    %v1462 = vadd.f32 0.0, %v1461
    %1463 = vdwg.mxu0
    %v1464 = vld [vmem:[%s7] sm:$0x3]
    %v1465 = vld [vmem:[#allocation13] sm:$0x3]
    %v1466 = vadd.f32 %v1306, %v1310
    %v1467 = vadd.f32 %v1466, %v1316
    %v1468 = vadd.f32 %v1467, %v1320
    %v1469 = vadd.f32 %v1468, %v1326
    %v1470 = vadd.f32 %v1469, %v1330
    %v1471 = vadd.f32 %v1470, %v1336
    %v1472 = vadd.f32 %v1471, %v1340
    %v1473 = vadd.f32 %v1472, %v1346
    %v1474 = vadd.f32 %v1473, %v1350
    %v1475 = vadd.f32 %v1474, %v1356
    %v1476 = vadd.f32 %v1475, %v1360
    %v1477 = vadd.f32 %v1476, %v1366
    %v1478 = vadd.f32 %v1477, %v1370
    %v1479 = vadd.f32 %v1478, %v1376
    %v1480 = vadd.f32 %v1479, %v1380
    %v1481 = vadd.f32 %v1480, %v1386
    %v1482 = vadd.f32 %v1481, %v1390
    %v1483 = vadd.f32 %v1482, %v1396
    %v1484 = vadd.f32 %v1483, %v1400
    %v1485 = vadd.f32 %v1484, %v1406
    %v1486 = vadd.f32 %v1485, %v1410
    %v1487 = vadd.f32 %v1486, %v1416
    %v1488 = vadd.f32 %v1487, %v1420
    %v1489 = vadd.f32 %v1488, %v1426
    %v1490 = vadd.f32 %v1489, %v1430
    %v1491 = vadd.f32 %v1490, %v1436
    %v1492 = vadd.f32 %v1491, %v1440
    %v1493 = vadd.f32 %v1492, %v1446
    %v1494 = vadd.f32 %v1493, %v1450
    %v1495 = vadd.f32 %v1494, %v1456
    %v1496 = vadd.f32 %v1495, %v1460
    %v1497 = vrot.slane %v1496, 4
    %v1498 = vadd.f32 %v1496, %v1497
    %v1499 = vrot.slane %v1498, 2
    %v1500 = vadd.f32 %v1498, %v1499
    %v1501 = vrot.slane %v1500, 1
    %v1502 = vadd.f32 %v1500, %v1501
    %v1503 = vadd.f32 %v1308, %v1312
    %v1504 = vadd.f32 %v1503, %v1318
    %v1505 = vadd.f32 %v1504, %v1322
    %v1506 = vadd.f32 %v1505, %v1328
    %v1507 = vadd.f32 %v1506, %v1332
    %v1508 = vadd.f32 %v1507, %v1338
    %v1509 = vadd.f32 %v1508, %v1342
    %v1510 = vadd.f32 %v1509, %v1348
    %v1511 = vadd.f32 %v1510, %v1352
    %v1512 = vadd.f32 %v1511, %v1358
    %v1513 = vadd.f32 %v1512, %v1362
    %v1514 = vadd.f32 %v1513, %v1368
    %v1515 = vadd.f32 %v1514, %v1372
    %v1516 = vadd.f32 %v1515, %v1378
    %v1517 = vadd.f32 %v1516, %v1382
    %v1518 = vadd.f32 %v1517, %v1388
    %v1519 = vadd.f32 %v1518, %v1392
    %v1520 = vadd.f32 %v1519, %v1398
    %v1521 = vadd.f32 %v1520, %v1402
    %v1522 = vadd.f32 %v1521, %v1408
    %v1523 = vadd.f32 %v1522, %v1412
    %v1524 = vadd.f32 %v1523, %v1418
    %v1525 = vadd.f32 %v1524, %v1422
    %v1526 = vadd.f32 %v1525, %v1428
    %v1527 = vadd.f32 %v1526, %v1432
    %v1528 = vadd.f32 %v1527, %v1438
    %v1529 = vadd.f32 %v1528, %v1442
    %v1530 = vadd.f32 %v1529, %v1448
    %v1531 = vadd.f32 %v1530, %v1452
    %v1532 = vadd.f32 %v1531, %v1458
    %v1533 = vadd.f32 %v1532, %v1462
    %v1534 = vrot.slane %v1533, 4
    %v1535 = vadd.f32 %v1533, %v1534
    %v1536 = vrot.slane %v1535, 2
    %v1537 = vadd.f32 %v1535, %v1536
    %v1538 = vrot.slane %v1537, 1
    %v1539 = vadd.f32 %v1537, %v1538
    %v1540 = vmul.f32 %v1502, %v880
    %v1541 = vmul.f32 %v1539, %v880
    %v1542 = vsub.f32 %v1306, %v1540
    %v1543 = vsub.f32 %v1308, %v1541
    %v1544 = vsub.f32 %v1310, %v1540
    %v1545 = vsub.f32 %v1312, %v1541
    %v1546 = vsub.f32 %v1316, %v1540
    %v1547 = vsub.f32 %v1318, %v1541
    %v1548 = vsub.f32 %v1320, %v1540
    %v1549 = vsub.f32 %v1322, %v1541
    %v1550 = vsub.f32 %v1326, %v1540
    %v1551 = vsub.f32 %v1328, %v1541
    %v1552 = vsub.f32 %v1330, %v1540
    %v1553 = vsub.f32 %v1332, %v1541
    %v1554 = vsub.f32 %v1336, %v1540
    %v1555 = vsub.f32 %v1338, %v1541
    %v1556 = vsub.f32 %v1340, %v1540
    %v1557 = vsub.f32 %v1342, %v1541
    %v1558 = vsub.f32 %v1346, %v1540
    %v1559 = vsub.f32 %v1348, %v1541
    %v1560 = vsub.f32 %v1350, %v1540
    %v1561 = vsub.f32 %v1352, %v1541
    %v1562 = vsub.f32 %v1356, %v1540
    %v1563 = vsub.f32 %v1358, %v1541
    %v1564 = vsub.f32 %v1360, %v1540
    %v1565 = vsub.f32 %v1362, %v1541
    %v1566 = vsub.f32 %v1366, %v1540
    %v1567 = vsub.f32 %v1368, %v1541
    %v1568 = vsub.f32 %v1370, %v1540
    %v1569 = vsub.f32 %v1372, %v1541
    %v1570 = vsub.f32 %v1376, %v1540
    %v1571 = vsub.f32 %v1378, %v1541
    %v1572 = vsub.f32 %v1380, %v1540
    %v1573 = vsub.f32 %v1382, %v1541
    %v1574 = vsub.f32 %v1386, %v1540
    %v1575 = vsub.f32 %v1388, %v1541
    %v1576 = vsub.f32 %v1390, %v1540
    %v1577 = vsub.f32 %v1392, %v1541
    %v1578 = vsub.f32 %v1396, %v1540
    %v1579 = vsub.f32 %v1398, %v1541
    %v1580 = vsub.f32 %v1400, %v1540
    %v1581 = vsub.f32 %v1402, %v1541
    %v1582 = vsub.f32 %v1406, %v1540
    %v1583 = vsub.f32 %v1408, %v1541
    %v1584 = vsub.f32 %v1410, %v1540
    %v1585 = vsub.f32 %v1412, %v1541
    %v1586 = vsub.f32 %v1416, %v1540
    %v1587 = vsub.f32 %v1418, %v1541
    %v1588 = vsub.f32 %v1420, %v1540
    %v1589 = vsub.f32 %v1422, %v1541
    %v1590 = vsub.f32 %v1426, %v1540
    %v1591 = vsub.f32 %v1428, %v1541
    %v1592 = vsub.f32 %v1430, %v1540
    %v1593 = vsub.f32 %v1432, %v1541
    %v1594 = vsub.f32 %v1436, %v1540
    %v1595 = vsub.f32 %v1438, %v1541
    %v1596 = vsub.f32 %v1440, %v1540
    %v1597 = vsub.f32 %v1442, %v1541
    %v1598 = vsub.f32 %v1446, %v1540
    %v1599 = vsub.f32 %v1448, %v1541
    %v1600 = vsub.f32 %v1450, %v1540
    %v1601 = vsub.f32 %v1452, %v1541
    %v1602 = vsub.f32 %v1456, %v1540
    %v1603 = vsub.f32 %v1458, %v1541
    %v1604 = vsub.f32 %v1460, %v1540
    %v1605 = vsub.f32 %v1462, %v1541
    %v1606 = vmul.f32 %v1542, %v1542
    %v1607 = vmul.f32 %v1543, %v1543
    %v1608 = vmul.f32 %v1544, %v1544
    %v1609 = vmul.f32 %v1545, %v1545
    %v1610 = vmul.f32 %v1546, %v1546
    %v1611 = vmul.f32 %v1547, %v1547
    %v1612 = vmul.f32 %v1548, %v1548
    %v1613 = vmul.f32 %v1549, %v1549
    %v1614 = vmul.f32 %v1550, %v1550
    %v1615 = vmul.f32 %v1551, %v1551
    %v1616 = vmul.f32 %v1552, %v1552
    %v1617 = vmul.f32 %v1553, %v1553
    %v1618 = vmul.f32 %v1554, %v1554
    %v1619 = vmul.f32 %v1555, %v1555
    %v1620 = vmul.f32 %v1556, %v1556
    %v1621 = vmul.f32 %v1557, %v1557
    %v1622 = vmul.f32 %v1558, %v1558
    %v1623 = vmul.f32 %v1559, %v1559
    %v1624 = vmul.f32 %v1560, %v1560
    %v1625 = vmul.f32 %v1561, %v1561
    %v1626 = vmul.f32 %v1562, %v1562
    %v1627 = vmul.f32 %v1563, %v1563
    %v1628 = vmul.f32 %v1564, %v1564
    %v1629 = vmul.f32 %v1565, %v1565
    %v1630 = vmul.f32 %v1566, %v1566
    %v1631 = vmul.f32 %v1567, %v1567
    %v1632 = vmul.f32 %v1568, %v1568
    %v1633 = vmul.f32 %v1569, %v1569
    %v1634 = vmul.f32 %v1570, %v1570
    %v1635 = vmul.f32 %v1571, %v1571
    %v1636 = vmul.f32 %v1572, %v1572
    %v1637 = vmul.f32 %v1573, %v1573
    %v1638 = vmul.f32 %v1574, %v1574
    %v1639 = vmul.f32 %v1575, %v1575
    %v1640 = vmul.f32 %v1576, %v1576
    %v1641 = vmul.f32 %v1577, %v1577
    %v1642 = vmul.f32 %v1578, %v1578
    %v1643 = vmul.f32 %v1579, %v1579
    %v1644 = vmul.f32 %v1580, %v1580
    %v1645 = vmul.f32 %v1581, %v1581
    %v1646 = vmul.f32 %v1582, %v1582
    %v1647 = vmul.f32 %v1583, %v1583
    %v1648 = vmul.f32 %v1584, %v1584
    %v1649 = vmul.f32 %v1585, %v1585
    %v1650 = vmul.f32 %v1586, %v1586
    %v1651 = vmul.f32 %v1587, %v1587
    %v1652 = vmul.f32 %v1588, %v1588
    %v1653 = vmul.f32 %v1589, %v1589
    %v1654 = vmul.f32 %v1590, %v1590
    %v1655 = vmul.f32 %v1591, %v1591
    %v1656 = vmul.f32 %v1592, %v1592
    %v1657 = vmul.f32 %v1593, %v1593
    %v1658 = vmul.f32 %v1594, %v1594
    %v1659 = vmul.f32 %v1595, %v1595
    %v1660 = vmul.f32 %v1596, %v1596
    %v1661 = vmul.f32 %v1597, %v1597
    %v1662 = vmul.f32 %v1598, %v1598
    %v1663 = vmul.f32 %v1599, %v1599
    %v1664 = vmul.f32 %v1600, %v1600
    %v1665 = vmul.f32 %v1601, %v1601
    %v1666 = vmul.f32 %v1602, %v1602
    %v1667 = vmul.f32 %v1603, %v1603
    %v1668 = vmul.f32 %v1604, %v1604
    %v1669 = vmul.f32 %v1605, %v1605
    %v1670 = vadd.f32 %v1606, %v1608
    %v1671 = vadd.f32 %v1670, %v1610
    %v1672 = vadd.f32 %v1671, %v1612
    %v1673 = vadd.f32 %v1672, %v1614
    %v1674 = vadd.f32 %v1673, %v1616
    %v1675 = vadd.f32 %v1674, %v1618
    %v1676 = vadd.f32 %v1675, %v1620
    %v1677 = vadd.f32 %v1676, %v1622
    %v1678 = vadd.f32 %v1677, %v1624
    %v1679 = vadd.f32 %v1678, %v1626
    %v1680 = vadd.f32 %v1679, %v1628
    %v1681 = vadd.f32 %v1680, %v1630
    %v1682 = vadd.f32 %v1681, %v1632
    %v1683 = vadd.f32 %v1682, %v1634
    %v1684 = vadd.f32 %v1683, %v1636
    %v1685 = vadd.f32 %v1684, %v1638
    %v1686 = vadd.f32 %v1685, %v1640
    %v1687 = vadd.f32 %v1686, %v1642
    %v1688 = vadd.f32 %v1687, %v1644
    %v1689 = vadd.f32 %v1688, %v1646
    %v1690 = vadd.f32 %v1689, %v1648
    %v1691 = vadd.f32 %v1690, %v1650
    %v1692 = vadd.f32 %v1691, %v1652
    %v1693 = vadd.f32 %v1692, %v1654
    %v1694 = vadd.f32 %v1693, %v1656
    %v1695 = vadd.f32 %v1694, %v1658
    %v1696 = vadd.f32 %v1695, %v1660
    %v1697 = vadd.f32 %v1696, %v1662
    %v1698 = vadd.f32 %v1697, %v1664
    %v1699 = vadd.f32 %v1698, %v1666
    %v1700 = vadd.f32 %v1699, %v1668
    %v1701 = vrot.slane %v1700, 4
    %v1702 = vadd.f32 %v1700, %v1701
    %v1703 = vrot.slane %v1702, 2
    %v1704 = vadd.f32 %v1702, %v1703
    %v1705 = vrot.slane %v1704, 1
    %v1706 = vadd.f32 %v1704, %v1705
    %v1707 = vadd.f32 %v1607, %v1609
    %v1708 = vadd.f32 %v1707, %v1611
    %v1709 = vadd.f32 %v1708, %v1613
    %v1710 = vadd.f32 %v1709, %v1615
    %v1711 = vadd.f32 %v1710, %v1617
    %v1712 = vadd.f32 %v1711, %v1619
    %v1713 = vadd.f32 %v1712, %v1621
    %v1714 = vadd.f32 %v1713, %v1623
    %v1715 = vadd.f32 %v1714, %v1625
    %v1716 = vadd.f32 %v1715, %v1627
    %v1717 = vadd.f32 %v1716, %v1629
    %v1718 = vadd.f32 %v1717, %v1631
    %v1719 = vadd.f32 %v1718, %v1633
    %v1720 = vadd.f32 %v1719, %v1635
    %v1721 = vadd.f32 %v1720, %v1637
    %v1722 = vadd.f32 %v1721, %v1639
    %v1723 = vadd.f32 %v1722, %v1641
    %v1724 = vadd.f32 %v1723, %v1643
    %v1725 = vadd.f32 %v1724, %v1645
    %v1726 = vadd.f32 %v1725, %v1647
    %v1727 = vadd.f32 %v1726, %v1649
    %v1728 = vadd.f32 %v1727, %v1651
    %v1729 = vadd.f32 %v1728, %v1653
    %v1730 = vadd.f32 %v1729, %v1655
    %v1731 = vadd.f32 %v1730, %v1657
    %v1732 = vadd.f32 %v1731, %v1659
    %v1733 = vadd.f32 %v1732, %v1661
    %v1734 = vadd.f32 %v1733, %v1663
    %v1735 = vadd.f32 %v1734, %v1665
    %v1736 = vadd.f32 %v1735, %v1667
    %v1737 = vadd.f32 %v1736, %v1669
    %v1738 = vrot.slane %v1737, 4
    %v1739 = vadd.f32 %v1737, %v1738
    %v1740 = vrot.slane %v1739, 2
    %v1741 = vadd.f32 %v1739, %v1740
    %v1742 = vrot.slane %v1741, 1
    %v1743 = vadd.f32 %v1741, %v1742
    %v1744 = vmul.f32 %v1706, %v880
    %v1745 = vmul.f32 %v1743, %v880
    %v1746 = vadd.f32 %v1744, 1e-05
    %v1747 = vadd.f32 %v1745, 1e-05
    %v1748 = vrsqrt.pop %v1746
    %v1749 = vrsqrt.pop %v1747
    %v1752 = vcombine.low %v1748, %v1749
    %v1754 = vunpack.c.l.s4 1966171168
    %v1755 = vunpack.c.0.s8 %v1754
    %v1756 = vlaneseq
    %v1757 = vshrl.u32 %v1756, 7
    %v1758 = vsub.s32 %v1755, %v1757
    %v1759 = vrot.slane %v1752, %v1758
    %v1761 = vunpack.c.l.s4 1966171168
    %v1762 = vunpack.c.0.s8 %v1761
    %v1763 = vlaneseq
    %v1764 = vshrl.u32 %v1763, 7
    %v1765 = vsub.s32 %v1762, %v1764
    %v1766 = vrot.slane %v1759, %v1765
    %v1768 = vmul.f32 %v1464, %v1766
    %v1770 = vlaneseq
    %v1771 = vshrl.u32 %v1770, 7
    %v1772 = vsub.s32 0, %v1771
    %v1773 = vrot.slane %v1768, %v1772
    %v1774 = vlaneseq
    %v1775 = vshrl.u32 %v1774, 7
    %v1776 = vsub.s32 1, %v1775
    %v1777 = vrot.slane %v1768, %v1776
    %v1780 = vmul.f32 %v1542, %v1773
    %v1781 = vmul.f32 %v1543, %v1777
    %v1782 = vmul.f32 %v1544, %v1773
    %v1783 = vmul.f32 %v1545, %v1777
    %v1784 = vmul.f32 %v1546, %v1773
    %v1785 = vmul.f32 %v1547, %v1777
    %v1786 = vmul.f32 %v1548, %v1773
    %v1787 = vmul.f32 %v1549, %v1777
    %v1788 = vmul.f32 %v1550, %v1773
    %v1789 = vmul.f32 %v1551, %v1777
    %v1790 = vmul.f32 %v1552, %v1773
    %v1791 = vmul.f32 %v1553, %v1777
    %v1792 = vmul.f32 %v1554, %v1773
    %v1793 = vmul.f32 %v1555, %v1777
    %v1794 = vmul.f32 %v1556, %v1773
    %v1795 = vmul.f32 %v1557, %v1777
    %v1796 = vmul.f32 %v1558, %v1773
    %v1797 = vmul.f32 %v1559, %v1777
    %v1798 = vmul.f32 %v1560, %v1773
    %v1799 = vmul.f32 %v1561, %v1777
    %v1800 = vmul.f32 %v1562, %v1773
    %v1801 = vmul.f32 %v1563, %v1777
    %v1802 = vmul.f32 %v1564, %v1773
    %v1803 = vmul.f32 %v1565, %v1777
    %v1804 = vmul.f32 %v1566, %v1773
    %v1805 = vmul.f32 %v1567, %v1777
    %v1806 = vmul.f32 %v1568, %v1773
    %v1807 = vmul.f32 %v1569, %v1777
    %v1808 = vmul.f32 %v1570, %v1773
    %v1809 = vmul.f32 %v1571, %v1777
    %v1810 = vmul.f32 %v1572, %v1773
    %v1811 = vmul.f32 %v1573, %v1777
    %v1812 = vmul.f32 %v1574, %v1773
    %v1813 = vmul.f32 %v1575, %v1777
    %v1814 = vmul.f32 %v1576, %v1773
    %v1815 = vmul.f32 %v1577, %v1777
    %v1816 = vmul.f32 %v1578, %v1773
    %v1817 = vmul.f32 %v1579, %v1777
    %v1818 = vmul.f32 %v1580, %v1773
    %v1819 = vmul.f32 %v1581, %v1777
    %v1820 = vmul.f32 %v1582, %v1773
    %v1821 = vmul.f32 %v1583, %v1777
    %v1822 = vmul.f32 %v1584, %v1773
    %v1823 = vmul.f32 %v1585, %v1777
    %v1824 = vmul.f32 %v1586, %v1773
    %v1825 = vmul.f32 %v1587, %v1777
    %v1826 = vmul.f32 %v1588, %v1773
    %v1827 = vmul.f32 %v1589, %v1777
    %v1828 = vmul.f32 %v1590, %v1773
    %v1829 = vmul.f32 %v1591, %v1777
    %v1830 = vmul.f32 %v1592, %v1773
    %v1831 = vmul.f32 %v1593, %v1777
    %v1832 = vmul.f32 %v1594, %v1773
    %v1833 = vmul.f32 %v1595, %v1777
    %v1834 = vmul.f32 %v1596, %v1773
    %v1835 = vmul.f32 %v1597, %v1777
    %v1836 = vmul.f32 %v1598, %v1773
    %v1837 = vmul.f32 %v1599, %v1777
    %v1838 = vmul.f32 %v1600, %v1773
    %v1839 = vmul.f32 %v1601, %v1777
    %v1840 = vmul.f32 %v1602, %v1773
    %v1841 = vmul.f32 %v1603, %v1777
    %v1842 = vmul.f32 %v1604, %v1773
    %v1843 = vmul.f32 %v1605, %v1777
    %v1845 = vlaneseq
    %v1846 = vshrl.u32 %v1845, 7
    %v1847 = vsub.s32 0, %v1846
    %v1848 = vrot.slane %v1465, %v1847
    %v1849 = vlaneseq
    %v1850 = vshrl.u32 %v1849, 7
    %v1851 = vsub.s32 1, %v1850
    %v1852 = vrot.slane %v1465, %v1851
    %v1855 = vadd.f32 %v1780, %v1848
    %v1856 = vadd.f32 %v1781, %v1852
    %v1857 = vadd.f32 %v1782, %v1848
    %v1858 = vadd.f32 %v1783, %v1852
    %v1859 = vadd.f32 %v1784, %v1848
    %v1860 = vadd.f32 %v1785, %v1852
    %v1861 = vadd.f32 %v1786, %v1848
    %v1862 = vadd.f32 %v1787, %v1852
    %v1863 = vadd.f32 %v1788, %v1848
    %v1864 = vadd.f32 %v1789, %v1852
    %v1865 = vadd.f32 %v1790, %v1848
    %v1866 = vadd.f32 %v1791, %v1852
    %v1867 = vadd.f32 %v1792, %v1848
    %v1868 = vadd.f32 %v1793, %v1852
    %v1869 = vadd.f32 %v1794, %v1848
    %v1870 = vadd.f32 %v1795, %v1852
    %v1871 = vadd.f32 %v1796, %v1848
    %v1872 = vadd.f32 %v1797, %v1852
    %v1873 = vadd.f32 %v1798, %v1848
    %v1874 = vadd.f32 %v1799, %v1852
    %v1875 = vadd.f32 %v1800, %v1848
    %v1876 = vadd.f32 %v1801, %v1852
    %v1877 = vadd.f32 %v1802, %v1848
    %v1878 = vadd.f32 %v1803, %v1852
    %v1879 = vadd.f32 %v1804, %v1848
    %v1880 = vadd.f32 %v1805, %v1852
    %v1881 = vadd.f32 %v1806, %v1848
    %v1882 = vadd.f32 %v1807, %v1852
    %v1883 = vadd.f32 %v1808, %v1848
    %v1884 = vadd.f32 %v1809, %v1852
    %v1885 = vadd.f32 %v1810, %v1848
    %v1886 = vadd.f32 %v1811, %v1852
    %v1887 = vadd.f32 %v1812, %v1848
    %v1888 = vadd.f32 %v1813, %v1852
    %v1889 = vadd.f32 %v1814, %v1848
    %v1890 = vadd.f32 %v1815, %v1852
    %v1891 = vadd.f32 %v1816, %v1848
    %v1892 = vadd.f32 %v1817, %v1852
    %v1893 = vadd.f32 %v1818, %v1848
    %v1894 = vadd.f32 %v1819, %v1852
    %v1895 = vadd.f32 %v1820, %v1848
    %v1896 = vadd.f32 %v1821, %v1852
    %v1897 = vadd.f32 %v1822, %v1848
    %v1898 = vadd.f32 %v1823, %v1852
    %v1899 = vadd.f32 %v1824, %v1848
    %v1900 = vadd.f32 %v1825, %v1852
    %v1901 = vadd.f32 %v1826, %v1848
    %v1902 = vadd.f32 %v1827, %v1852
    %v1903 = vadd.f32 %v1828, %v1848
    %v1904 = vadd.f32 %v1829, %v1852
    %v1905 = vadd.f32 %v1830, %v1848
    %v1906 = vadd.f32 %v1831, %v1852
    %v1907 = vadd.f32 %v1832, %v1848
    %v1908 = vadd.f32 %v1833, %v1852
    %v1909 = vadd.f32 %v1834, %v1848
    %v1910 = vadd.f32 %v1835, %v1852
    %v1911 = vadd.f32 %v1836, %v1848
    %v1912 = vadd.f32 %v1837, %v1852
    %v1913 = vadd.f32 %v1838, %v1848
    %v1914 = vadd.f32 %v1839, %v1852
    %v1915 = vadd.f32 %v1840, %v1848
    %v1916 = vadd.f32 %v1841, %v1852
    %v1917 = vadd.f32 %v1842, %v1848
    %v1918 = vadd.f32 %v1843, %v1852
    %vm1919 = vcmp.ge.f32.partialorder %v1855, 0.0
    %vm1920 = vcmp.ge.f32.partialorder %v1856, 0.0
    %vm1921 = vcmp.ge.f32.partialorder %v1857, 0.0
    %vm1922 = vcmp.ge.f32.partialorder %v1858, 0.0
    %vm1923 = vcmp.ge.f32.partialorder %v1859, 0.0
    %vm1924 = vcmp.ge.f32.partialorder %v1860, 0.0
    %vm1925 = vcmp.ge.f32.partialorder %v1861, 0.0
    %vm1926 = vcmp.ge.f32.partialorder %v1862, 0.0
    %vm1927 = vcmp.ge.f32.partialorder %v1863, 0.0
    %vm1928 = vcmp.ge.f32.partialorder %v1864, 0.0
    %vm1929 = vcmp.ge.f32.partialorder %v1865, 0.0
    %vm1930 = vcmp.ge.f32.partialorder %v1866, 0.0
    %vm1931 = vcmp.ge.f32.partialorder %v1867, 0.0
    %vm1932 = vcmp.ge.f32.partialorder %v1868, 0.0
    %vm1933 = vcmp.ge.f32.partialorder %v1869, 0.0
    %vm1934 = vcmp.ge.f32.partialorder %v1870, 0.0
    %vm1935 = vcmp.ge.f32.partialorder %v1871, 0.0
    %vm1936 = vcmp.ge.f32.partialorder %v1872, 0.0
    %vm1937 = vcmp.ge.f32.partialorder %v1873, 0.0
    %vm1938 = vcmp.ge.f32.partialorder %v1874, 0.0
    %vm1939 = vcmp.ge.f32.partialorder %v1875, 0.0
    %vm1940 = vcmp.ge.f32.partialorder %v1876, 0.0
    %vm1941 = vcmp.ge.f32.partialorder %v1877, 0.0
    %vm1942 = vcmp.ge.f32.partialorder %v1878, 0.0
    %vm1943 = vcmp.ge.f32.partialorder %v1879, 0.0
    %vm1944 = vcmp.ge.f32.partialorder %v1880, 0.0
    %vm1945 = vcmp.ge.f32.partialorder %v1881, 0.0
    %vm1946 = vcmp.ge.f32.partialorder %v1882, 0.0
    %vm1947 = vcmp.ge.f32.partialorder %v1883, 0.0
    %vm1948 = vcmp.ge.f32.partialorder %v1884, 0.0
    %vm1949 = vcmp.ge.f32.partialorder %v1885, 0.0
    %vm1950 = vcmp.ge.f32.partialorder %v1886, 0.0
    %vm1951 = vcmp.ge.f32.partialorder %v1887, 0.0
    %vm1952 = vcmp.ge.f32.partialorder %v1888, 0.0
    %vm1953 = vcmp.ge.f32.partialorder %v1889, 0.0
    %vm1954 = vcmp.ge.f32.partialorder %v1890, 0.0
    %vm1955 = vcmp.ge.f32.partialorder %v1891, 0.0
    %vm1956 = vcmp.ge.f32.partialorder %v1892, 0.0
    %vm1957 = vcmp.ge.f32.partialorder %v1893, 0.0
    %vm1958 = vcmp.ge.f32.partialorder %v1894, 0.0
    %vm1959 = vcmp.ge.f32.partialorder %v1895, 0.0
    %vm1960 = vcmp.ge.f32.partialorder %v1896, 0.0
    %vm1961 = vcmp.ge.f32.partialorder %v1897, 0.0
    %vm1962 = vcmp.ge.f32.partialorder %v1898, 0.0
    %vm1963 = vcmp.ge.f32.partialorder %v1899, 0.0
    %vm1964 = vcmp.ge.f32.partialorder %v1900, 0.0
    %vm1965 = vcmp.ge.f32.partialorder %v1901, 0.0
    %vm1966 = vcmp.ge.f32.partialorder %v1902, 0.0
    %vm1967 = vcmp.ge.f32.partialorder %v1903, 0.0
    %vm1968 = vcmp.ge.f32.partialorder %v1904, 0.0
    %vm1969 = vcmp.ge.f32.partialorder %v1905, 0.0
    %vm1970 = vcmp.ge.f32.partialorder %v1906, 0.0
    %vm1971 = vcmp.ge.f32.partialorder %v1907, 0.0
    %vm1972 = vcmp.ge.f32.partialorder %v1908, 0.0
    %vm1973 = vcmp.ge.f32.partialorder %v1909, 0.0
    %vm1974 = vcmp.ge.f32.partialorder %v1910, 0.0
    %vm1975 = vcmp.ge.f32.partialorder %v1911, 0.0
    %vm1976 = vcmp.ge.f32.partialorder %v1912, 0.0
    %vm1977 = vcmp.ge.f32.partialorder %v1913, 0.0
    %vm1978 = vcmp.ge.f32.partialorder %v1914, 0.0
    %vm1979 = vcmp.ge.f32.partialorder %v1915, 0.0
    %vm1980 = vcmp.ge.f32.partialorder %v1916, 0.0
    %vm1981 = vcmp.ge.f32.partialorder %v1917, 0.0
    %vm1982 = vcmp.ge.f32.partialorder %v1918, 0.0
    %v1983 = vmul.f32 %v1855, 0.2
    %v1984 = vmul.f32 %v1856, 0.2
    %v1985 = vmul.f32 %v1857, 0.2
    %v1986 = vmul.f32 %v1858, 0.2
    %v1987 = vmul.f32 %v1859, 0.2
    %v1988 = vmul.f32 %v1860, 0.2
    %v1989 = vmul.f32 %v1861, 0.2
    %v1990 = vmul.f32 %v1862, 0.2
    %v1991 = vmul.f32 %v1863, 0.2
    %v1992 = vmul.f32 %v1864, 0.2
    %v1993 = vmul.f32 %v1865, 0.2
    %v1994 = vmul.f32 %v1866, 0.2
    %v1995 = vmul.f32 %v1867, 0.2
    %v1996 = vmul.f32 %v1868, 0.2
    %v1997 = vmul.f32 %v1869, 0.2
    %v1998 = vmul.f32 %v1870, 0.2
    %v1999 = vmul.f32 %v1871, 0.2
    %v2000 = vmul.f32 %v1872, 0.2
    %v2001 = vmul.f32 %v1873, 0.2
    %v2002 = vmul.f32 %v1874, 0.2
    %v2003 = vmul.f32 %v1875, 0.2
    %v2004 = vmul.f32 %v1876, 0.2
    %v2005 = vmul.f32 %v1877, 0.2
    %v2006 = vmul.f32 %v1878, 0.2
    %v2007 = vmul.f32 %v1879, 0.2
    %v2008 = vmul.f32 %v1880, 0.2
    %v2009 = vmul.f32 %v1881, 0.2
    %v2010 = vmul.f32 %v1882, 0.2
    %v2011 = vmul.f32 %v1883, 0.2
    %v2012 = vmul.f32 %v1884, 0.2
    %v2013 = vmul.f32 %v1885, 0.2
    %v2014 = vmul.f32 %v1886, 0.2
    %v2015 = vmul.f32 %v1887, 0.2
    %v2016 = vmul.f32 %v1888, 0.2
    %v2017 = vmul.f32 %v1889, 0.2
    %v2018 = vmul.f32 %v1890, 0.2
    %v2019 = vmul.f32 %v1891, 0.2
    %v2020 = vmul.f32 %v1892, 0.2
    %v2021 = vmul.f32 %v1893, 0.2
    %v2022 = vmul.f32 %v1894, 0.2
    %v2023 = vmul.f32 %v1895, 0.2
    %v2024 = vmul.f32 %v1896, 0.2
    %v2025 = vmul.f32 %v1897, 0.2
    %v2026 = vmul.f32 %v1898, 0.2
    %v2027 = vmul.f32 %v1899, 0.2
    %v2028 = vmul.f32 %v1900, 0.2
    %v2029 = vmul.f32 %v1901, 0.2
    %v2030 = vmul.f32 %v1902, 0.2
    %v2031 = vmul.f32 %v1903, 0.2
    %v2032 = vmul.f32 %v1904, 0.2
    %v2033 = vmul.f32 %v1905, 0.2
    %v2034 = vmul.f32 %v1906, 0.2
    %v2035 = vmul.f32 %v1907, 0.2
    %v2036 = vmul.f32 %v1908, 0.2
    %v2037 = vmul.f32 %v1909, 0.2
    %v2038 = vmul.f32 %v1910, 0.2
    %v2039 = vmul.f32 %v1911, 0.2
    %v2040 = vmul.f32 %v1912, 0.2
    %v2041 = vmul.f32 %v1913, 0.2
    %v2042 = vmul.f32 %v1914, 0.2
    %v2043 = vmul.f32 %v1915, 0.2
    %v2044 = vmul.f32 %v1916, 0.2
    %v2045 = vmul.f32 %v1917, 0.2
    %v2046 = vmul.f32 %v1918, 0.2
    %v2047 = vsel %vm1919, %v1855, %v1983
    %v2048 = vsel %vm1920, %v1856, %v1984
    %v2049 = vsel %vm1921, %v1857, %v1985
    %v2050 = vsel %vm1922, %v1858, %v1986
    %v2051 = vsel %vm1923, %v1859, %v1987
    %v2052 = vsel %vm1924, %v1860, %v1988
    %v2053 = vsel %vm1925, %v1861, %v1989
    %v2054 = vsel %vm1926, %v1862, %v1990
    %v2055 = vsel %vm1927, %v1863, %v1991
    %v2056 = vsel %vm1928, %v1864, %v1992
    %v2057 = vsel %vm1929, %v1865, %v1993
    %v2058 = vsel %vm1930, %v1866, %v1994
    %v2059 = vsel %vm1931, %v1867, %v1995
    %v2060 = vsel %vm1932, %v1868, %v1996
    %v2061 = vsel %vm1933, %v1869, %v1997
    %v2062 = vsel %vm1934, %v1870, %v1998
    %v2063 = vsel %vm1935, %v1871, %v1999
    %v2064 = vsel %vm1936, %v1872, %v2000
    %v2065 = vsel %vm1937, %v1873, %v2001
    %v2066 = vsel %vm1938, %v1874, %v2002
    %v2067 = vsel %vm1939, %v1875, %v2003
    %v2068 = vsel %vm1940, %v1876, %v2004
    %v2069 = vsel %vm1941, %v1877, %v2005
    %v2070 = vsel %vm1942, %v1878, %v2006
    %v2071 = vsel %vm1943, %v1879, %v2007
    %v2072 = vsel %vm1944, %v1880, %v2008
    %v2073 = vsel %vm1945, %v1881, %v2009
    %v2074 = vsel %vm1946, %v1882, %v2010
    %v2075 = vsel %vm1947, %v1883, %v2011
    %v2076 = vsel %vm1948, %v1884, %v2012
    %v2077 = vsel %vm1949, %v1885, %v2013
    %v2078 = vsel %vm1950, %v1886, %v2014
    %v2079 = vsel %vm1951, %v1887, %v2015
    %v2080 = vsel %vm1952, %v1888, %v2016
    %v2081 = vsel %vm1953, %v1889, %v2017
    %v2082 = vsel %vm1954, %v1890, %v2018
    %v2083 = vsel %vm1955, %v1891, %v2019
    %v2084 = vsel %vm1956, %v1892, %v2020
    %v2085 = vsel %vm1957, %v1893, %v2021
    %v2086 = vsel %vm1958, %v1894, %v2022
    %v2087 = vsel %vm1959, %v1895, %v2023
    %v2088 = vsel %vm1960, %v1896, %v2024
    %v2089 = vsel %vm1961, %v1897, %v2025
    %v2090 = vsel %vm1962, %v1898, %v2026
    %v2091 = vsel %vm1963, %v1899, %v2027
    %v2092 = vsel %vm1964, %v1900, %v2028
    %v2093 = vsel %vm1965, %v1901, %v2029
    %v2094 = vsel %vm1966, %v1902, %v2030
    %v2095 = vsel %vm1967, %v1903, %v2031
    %v2096 = vsel %vm1968, %v1904, %v2032
    %v2097 = vsel %vm1969, %v1905, %v2033
    %v2098 = vsel %vm1970, %v1906, %v2034
    %v2099 = vsel %vm1971, %v1907, %v2035
    %v2100 = vsel %vm1972, %v1908, %v2036
    %v2101 = vsel %vm1973, %v1909, %v2037
    %v2102 = vsel %vm1974, %v1910, %v2038
    %v2103 = vsel %vm1975, %v1911, %v2039
    %v2104 = vsel %vm1976, %v1912, %v2040
    %v2105 = vsel %vm1977, %v1913, %v2041
    %v2106 = vsel %vm1978, %v1914, %v2042
    %v2107 = vsel %vm1979, %v1915, %v2043
    %v2108 = vsel %vm1980, %v1916, %v2044
    %v2109 = vsel %vm1981, %v1917, %v2045
    %v2110 = vsel %vm1982, %v1918, %v2046
    %v2111 = vpack.c.bf16 %v2049, %v2047
    %v2112 = vpack.c.bf16 %v2050, %v2048
    %v2113 = vpack.c.bf16 %v2053, %v2051
    %v2114 = vpack.c.bf16 %v2054, %v2052
    %v2115 = vpack.c.bf16 %v2057, %v2055
    %v2116 = vpack.c.bf16 %v2058, %v2056
    %v2117 = vpack.c.bf16 %v2061, %v2059
    %v2118 = vpack.c.bf16 %v2062, %v2060
    %v2119 = vpack.c.bf16 %v2065, %v2063
    %v2120 = vpack.c.bf16 %v2066, %v2064
    %v2121 = vpack.c.bf16 %v2069, %v2067
    %v2122 = vpack.c.bf16 %v2070, %v2068
    %v2123 = vpack.c.bf16 %v2073, %v2071
    %v2124 = vpack.c.bf16 %v2074, %v2072
    %v2125 = vpack.c.bf16 %v2077, %v2075
    %v2126 = vpack.c.bf16 %v2078, %v2076
    %v2127 = vpack.c.bf16 %v2081, %v2079
    %v2128 = vpack.c.bf16 %v2082, %v2080
    %v2129 = vpack.c.bf16 %v2085, %v2083
    %v2130 = vpack.c.bf16 %v2086, %v2084
    %v2131 = vpack.c.bf16 %v2089, %v2087
    %v2132 = vpack.c.bf16 %v2090, %v2088
    %v2133 = vpack.c.bf16 %v2093, %v2091
    %v2134 = vpack.c.bf16 %v2094, %v2092
    %v2135 = vpack.c.bf16 %v2097, %v2095
    %v2136 = vpack.c.bf16 %v2098, %v2096
    %v2137 = vpack.c.bf16 %v2101, %v2099
    %v2138 = vpack.c.bf16 %v2102, %v2100
    %v2139 = vpack.c.bf16 %v2105, %v2103
    %v2140 = vpack.c.bf16 %v2106, %v2104
    %v2141 = vpack.c.bf16 %v2109, %v2107
    %v2142 = vpack.c.bf16 %v2110, %v2108
    %v2143 = vld [vmem:[%s9] sm:$0xf]
    %v2144 = vld [vmem:[%s9 + $0x4] sm:$0xf]
    %v2145 = vld [vmem:[%s9 + $0x8] sm:$0xf]
    %v2146 = vld [vmem:[%s9 + $0xc] sm:$0xf]
    %v2147 = vld [vmem:[%s9 + $0x10] sm:$0xf]
    %v2148 = vld [vmem:[%s9 + $0x14] sm:$0xf]
    %v2149 = vld [vmem:[%s9 + $0x18] sm:$0xf]
    %v2150 = vld [vmem:[%s9 + $0x1c] sm:$0xf]
    %v2151 = vld [vmem:[%s9 + $0x20] sm:$0xf]
    %v2152 = vld [vmem:[%s9 + $0x24] sm:$0xf]
    %v2153 = vld [vmem:[%s9 + $0x28] sm:$0xf]
    %v2154 = vld [vmem:[%s9 + $0x2c] sm:$0xf]
    %v2155 = vld [vmem:[%s9 + $0x30] sm:$0xf]
    %v2156 = vld [vmem:[%s9 + $0x34] sm:$0xf]
    %v2157 = vld [vmem:[%s9 + $0x38] sm:$0xf]
    %v2158 = vld [vmem:[%s9 + $0x3c] sm:$0xf]
    %v2159 = vld [vmem:[%s9 + $0x40] sm:$0xf]
    %v2160 = vld [vmem:[%s9 + $0x44] sm:$0xf]
    %v2161 = vld [vmem:[%s9 + $0x48] sm:$0xf]
    %v2162 = vld [vmem:[%s9 + $0x4c] sm:$0xf]
    %v2163 = vld [vmem:[%s9 + $0x50] sm:$0xf]
    %v2164 = vld [vmem:[%s9 + $0x54] sm:$0xf]
    %v2165 = vld [vmem:[%s9 + $0x58] sm:$0xf]
    %v2166 = vld [vmem:[%s9 + $0x5c] sm:$0xf]
    %v2167 = vld [vmem:[%s9 + $0x60] sm:$0xf]
    %v2168 = vld [vmem:[%s9 + $0x64] sm:$0xf]
    %v2169 = vld [vmem:[%s9 + $0x68] sm:$0xf]
    %v2170 = vld [vmem:[%s9 + $0x6c] sm:$0xf]
    %v2171 = vld [vmem:[%s9 + $0x70] sm:$0xf]
    %v2172 = vld [vmem:[%s9 + $0x74] sm:$0xf]
    %v2173 = vld [vmem:[%s9 + $0x78] sm:$0xf]
    %v2174 = vld [vmem:[%s9 + $0x7c] sm:$0xf]
    %v2175 = vld [vmem:[%s10] sm:$0x1]
    %v2177 = vlaneseq
    %v2178 = vshrl.u32 %v2177, 7
    %v2179 = vsub.s32 0, %v2178
    %v2180 = vrot.slane %v2175, %v2179
    %v2214 = vunpack.c.l.b16 %v2143
    %v2215 = vunpack.c.l.b16 %v2144
    %v2216 = vunpack.c.l.b16 %v2145
    %v2217 = vunpack.c.l.b16 %v2146
    %v2218 = vunpack.c.l.b16 %v2147
    %v2219 = vunpack.c.l.b16 %v2148
    %v2220 = vunpack.c.l.b16 %v2149
    %v2221 = vunpack.c.l.b16 %v2150
    %v2222 = vunpack.c.l.b16 %v2151
    %v2223 = vunpack.c.l.b16 %v2152
    %v2224 = vunpack.c.l.b16 %v2153
    %v2225 = vunpack.c.l.b16 %v2154
    %v2226 = vunpack.c.l.b16 %v2155
    %v2227 = vunpack.c.l.b16 %v2156
    %v2228 = vunpack.c.l.b16 %v2157
    %v2229 = vunpack.c.l.b16 %v2158
    %v2230 = vunpack.c.l.b16 %v2159
    %v2231 = vunpack.c.l.b16 %v2160
    %v2232 = vunpack.c.l.b16 %v2161
    %v2233 = vunpack.c.l.b16 %v2162
    %v2234 = vunpack.c.l.b16 %v2163
    %v2235 = vunpack.c.l.b16 %v2164
    %v2236 = vunpack.c.l.b16 %v2165
    %v2237 = vunpack.c.l.b16 %v2166
    %v2238 = vunpack.c.l.b16 %v2167
    %v2239 = vunpack.c.l.b16 %v2168
    %v2240 = vunpack.c.l.b16 %v2169
    %v2241 = vunpack.c.l.b16 %v2170
    %v2242 = vunpack.c.l.b16 %v2171
    %v2243 = vunpack.c.l.b16 %v2172
    %v2244 = vunpack.c.l.b16 %v2173
    %v2245 = vunpack.c.l.b16 %v2174
    %v2246 = vpack.c.b16 %v2215, %v2214
    %v2247 = vpack.c.b16 %v2217, %v2216
    %v2248 = vpack.c.b16 %v2219, %v2218
    %v2249 = vpack.c.b16 %v2221, %v2220
    %v2250 = vpack.c.b16 %v2223, %v2222
    %v2251 = vpack.c.b16 %v2225, %v2224
    %v2252 = vpack.c.b16 %v2227, %v2226
    %v2253 = vpack.c.b16 %v2229, %v2228
    %v2254 = vpack.c.b16 %v2231, %v2230
    %v2255 = vpack.c.b16 %v2233, %v2232
    %v2256 = vpack.c.b16 %v2235, %v2234
    %v2257 = vpack.c.b16 %v2237, %v2236
    %v2258 = vpack.c.b16 %v2239, %v2238
    %v2259 = vpack.c.b16 %v2241, %v2240
    %v2260 = vpack.c.b16 %v2243, %v2242
    %v2261 = vpack.c.b16 %v2245, %v2244
    %2278 = vmatprep.subr.bf16.mxu0 0
    %2279 = vmatpush1.bf16.msra.mxu0 %v2246
    %2280 = vmatprep.subr.bf16.mxu0 0
    %2281 = vmatpush1.bf16.msra.mxu0 %v2247
    %2282 = vmatprep.subr.bf16.mxu0 0
    %2283 = vmatpush1.bf16.msra.mxu0 %v2248
    %2284 = vmatprep.subr.bf16.mxu0 0
    %2285 = vmatpush1.bf16.msra.mxu0 %v2249
    %2286 = vmatprep.subr.bf16.mxu0 0
    %2287 = vmatpush1.bf16.msra.mxu0 %v2250
    %2288 = vmatprep.subr.bf16.mxu0 0
    %2289 = vmatpush1.bf16.msra.mxu0 %v2251
    %2290 = vmatprep.subr.bf16.mxu0 0
    %2291 = vmatpush1.bf16.msra.mxu0 %v2252
    %2292 = vmatprep.subr.bf16.mxu0 0
    %2293 = vmatpush1.bf16.msra.mxu0 %v2253
    %2294 = vmatprep.subr.bf16.mxu0 0
    %2295 = vmatpush1.bf16.msra.mxu0 %v2254
    %2296 = vmatprep.subr.bf16.mxu0 0
    %2297 = vmatpush1.bf16.msra.mxu0 %v2255
    %2298 = vmatprep.subr.bf16.mxu0 0
    %2299 = vmatpush1.bf16.msra.mxu0 %v2256
    %2300 = vmatprep.subr.bf16.mxu0 0
    %2301 = vmatpush1.bf16.msra.mxu0 %v2257
    %2302 = vmatprep.subr.bf16.mxu0 0
    %2303 = vmatpush1.bf16.msra.mxu0 %v2258
    %2304 = vmatprep.subr.bf16.mxu0 0
    %2305 = vmatpush1.bf16.msra.mxu0 %v2259
    %2306 = vmatprep.subr.bf16.mxu0 0
    %2307 = vmatpush1.bf16.msra.mxu0 %v2260
    %2308 = vmatprep.subr.bf16.mxu0 0
    %2309 = vmatpush1.bf16.msra.mxu0 %v2261
    %2310 = vmatprep.mubr.bf16.mxu0 %v2112
    %2311 = vmatmul.mubr.bf16.gmra.mrb[0].mxu0 %v2111
    %v2312 = vpop.f32.mrb[0].mxu0
    %v2313 = vadd.f32 %v2180, %v2312
    %v2314 = vpop.f32.mrb[0].mxu0
    %v2315 = vpop.f32.mrb[0].mxu0
    %v2316 = vadd.f32 %v2180, %v2315
    %v2317 = vpop.f32.mrb[0].mxu0
    %2318 = vmatprep.mubr.bf16.mxu0 %v2114
    %2319 = vmatmul.mubr.bf16.gmra.mrb[0].mxu0 %v2113
    %v2320 = vpop.f32.mrb[0].mxu0
    %v2321 = vadd.f32 %v2180, %v2320
    %v2322 = vpop.f32.mrb[0].mxu0
    %v2323 = vpop.f32.mrb[0].mxu0
    %v2324 = vadd.f32 %v2180, %v2323
    %v2325 = vpop.f32.mrb[0].mxu0
    %2326 = vmatprep.mubr.bf16.mxu0 %v2116
    %2327 = vmatmul.mubr.bf16.gmra.mrb[0].mxu0 %v2115
    %v2328 = vpop.f32.mrb[0].mxu0
    %v2329 = vadd.f32 %v2180, %v2328
    %v2330 = vpop.f32.mrb[0].mxu0
    %v2331 = vpop.f32.mrb[0].mxu0
    %v2332 = vadd.f32 %v2180, %v2331
    %v2333 = vpop.f32.mrb[0].mxu0
    %2334 = vmatprep.mubr.bf16.mxu0 %v2118
    %2335 = vmatmul.mubr.bf16.gmra.mrb[0].mxu0 %v2117
    %v2336 = vpop.f32.mrb[0].mxu0
    %v2337 = vadd.f32 %v2180, %v2336
    %v2338 = vpop.f32.mrb[0].mxu0
    %v2339 = vpop.f32.mrb[0].mxu0
    %v2340 = vadd.f32 %v2180, %v2339
    %v2341 = vpop.f32.mrb[0].mxu0
    %2342 = vmatprep.mubr.bf16.mxu0 %v2120
    %2343 = vmatmul.mubr.bf16.gmra.mrb[0].mxu0 %v2119
    %v2344 = vpop.f32.mrb[0].mxu0
    %v2345 = vadd.f32 %v2180, %v2344
    %v2346 = vpop.f32.mrb[0].mxu0
    %v2347 = vpop.f32.mrb[0].mxu0
    %v2348 = vadd.f32 %v2180, %v2347
    %v2349 = vpop.f32.mrb[0].mxu0
    %2350 = vmatprep.mubr.bf16.mxu0 %v2122
    %2351 = vmatmul.mubr.bf16.gmra.mrb[0].mxu0 %v2121
    %v2352 = vpop.f32.mrb[0].mxu0
    %v2353 = vadd.f32 %v2180, %v2352
    %v2354 = vpop.f32.mrb[0].mxu0
    %v2355 = vpop.f32.mrb[0].mxu0
    %v2356 = vadd.f32 %v2180, %v2355
    %v2357 = vpop.f32.mrb[0].mxu0
    %2358 = vmatprep.mubr.bf16.mxu0 %v2124
    %2359 = vmatmul.mubr.bf16.gmra.mrb[0].mxu0 %v2123
    %v2360 = vpop.f32.mrb[0].mxu0
    %v2361 = vadd.f32 %v2180, %v2360
    %v2362 = vpop.f32.mrb[0].mxu0
    %v2363 = vpop.f32.mrb[0].mxu0
    %v2364 = vadd.f32 %v2180, %v2363
    %v2365 = vpop.f32.mrb[0].mxu0
    %2366 = vmatprep.mubr.bf16.mxu0 %v2126
    %2367 = vmatmul.mubr.bf16.gmra.mrb[0].mxu0 %v2125
    %v2368 = vpop.f32.mrb[0].mxu0
    %v2369 = vadd.f32 %v2180, %v2368
    %v2370 = vpop.f32.mrb[0].mxu0
    %v2371 = vpop.f32.mrb[0].mxu0
    %v2372 = vadd.f32 %v2180, %v2371
    %v2373 = vpop.f32.mrb[0].mxu0
    %2374 = vmatprep.mubr.bf16.mxu0 %v2128
    %2375 = vmatmul.mubr.bf16.gmra.mrb[0].mxu0 %v2127
    %v2376 = vpop.f32.mrb[0].mxu0
    %v2377 = vadd.f32 %v2180, %v2376
    %v2378 = vpop.f32.mrb[0].mxu0
    %v2379 = vpop.f32.mrb[0].mxu0
    %v2380 = vadd.f32 %v2180, %v2379
    %v2381 = vpop.f32.mrb[0].mxu0
    %2382 = vmatprep.mubr.bf16.mxu0 %v2130
    %2383 = vmatmul.mubr.bf16.gmra.mrb[0].mxu0 %v2129
    %v2384 = vpop.f32.mrb[0].mxu0
    %v2385 = vadd.f32 %v2180, %v2384
    %v2386 = vpop.f32.mrb[0].mxu0
    %v2387 = vpop.f32.mrb[0].mxu0
    %v2388 = vadd.f32 %v2180, %v2387
    %v2389 = vpop.f32.mrb[0].mxu0
    %2390 = vmatprep.mubr.bf16.mxu0 %v2132
    %2391 = vmatmul.mubr.bf16.gmra.mrb[0].mxu0 %v2131
    %v2392 = vpop.f32.mrb[0].mxu0
    %v2393 = vadd.f32 %v2180, %v2392
    %v2394 = vpop.f32.mrb[0].mxu0
    %v2395 = vpop.f32.mrb[0].mxu0
    %v2396 = vadd.f32 %v2180, %v2395
    %v2397 = vpop.f32.mrb[0].mxu0
    %2398 = vmatprep.mubr.bf16.mxu0 %v2134
    %2399 = vmatmul.mubr.bf16.gmra.mrb[0].mxu0 %v2133
    %v2400 = vpop.f32.mrb[0].mxu0
    %v2401 = vadd.f32 %v2180, %v2400
    %v2402 = vpop.f32.mrb[0].mxu0
    %v2403 = vpop.f32.mrb[0].mxu0
    %v2404 = vadd.f32 %v2180, %v2403
    %v2405 = vpop.f32.mrb[0].mxu0
    %2406 = vmatprep.mubr.bf16.mxu0 %v2136
    %2407 = vmatmul.mubr.bf16.gmra.mrb[0].mxu0 %v2135
    %v2408 = vpop.f32.mrb[0].mxu0
    %v2409 = vadd.f32 %v2180, %v2408
    %v2410 = vpop.f32.mrb[0].mxu0
    %v2411 = vpop.f32.mrb[0].mxu0
    %v2412 = vadd.f32 %v2180, %v2411
    %v2413 = vpop.f32.mrb[0].mxu0
    %2414 = vmatprep.mubr.bf16.mxu0 %v2138
    %2415 = vmatmul.mubr.bf16.gmra.mrb[0].mxu0 %v2137
    %v2416 = vpop.f32.mrb[0].mxu0
    %v2417 = vadd.f32 %v2180, %v2416
    %v2418 = vpop.f32.mrb[0].mxu0
    %v2419 = vpop.f32.mrb[0].mxu0
    %v2420 = vadd.f32 %v2180, %v2419
    %v2421 = vpop.f32.mrb[0].mxu0
    %2422 = vmatprep.mubr.bf16.mxu0 %v2140
    %2423 = vmatmul.mubr.bf16.gmra.mrb[0].mxu0 %v2139
    %v2424 = vpop.f32.mrb[0].mxu0
    %v2425 = vadd.f32 %v2180, %v2424
    %v2426 = vpop.f32.mrb[0].mxu0
    %v2427 = vpop.f32.mrb[0].mxu0
    %v2428 = vadd.f32 %v2180, %v2427
    %v2429 = vpop.f32.mrb[0].mxu0
    %2430 = vmatprep.mubr.bf16.mxu0 %v2142
    %2431 = vmatmul.mubr.bf16.gmra.mrb[0].mxu0 %v2141
    %v2432 = vpop.f32.mrb[0].mxu0
    %v2433 = vadd.f32 %v2180, %v2432
    %v2434 = vpop.f32.mrb[0].mxu0
    %v2435 = vpop.f32.mrb[0].mxu0
    %v2436 = vadd.f32 %v2180, %v2435
    %v2437 = vpop.f32.mrb[0].mxu0
    %2438 = vdwg.mxu0
    %2439 = vst [vmem:[#allocation14] sm:$0xff] %v2313
    %2440 = vst [vmem:[#allocation14 + $0x8] sm:$0xff] %v2316
    %2441 = vst [vmem:[#allocation14 + $0x10] sm:$0xff] %v2321
    %2442 = vst [vmem:[#allocation14 + $0x18] sm:$0xff] %v2324
    %2443 = vst [vmem:[#allocation14 + $0x20] sm:$0xff] %v2329
    %2444 = vst [vmem:[#allocation14 + $0x28] sm:$0xff] %v2332
    %2445 = vst [vmem:[#allocation14 + $0x30] sm:$0xff] %v2337
    %2446 = vst [vmem:[#allocation14 + $0x38] sm:$0xff] %v2340
    %2447 = vst [vmem:[#allocation14 + $0x40] sm:$0xff] %v2345
    %2448 = vst [vmem:[#allocation14 + $0x48] sm:$0xff] %v2348
    %2449 = vst [vmem:[#allocation14 + $0x50] sm:$0xff] %v2353
    %2450 = vst [vmem:[#allocation14 + $0x58] sm:$0xff] %v2356
    %2451 = vst [vmem:[#allocation14 + $0x60] sm:$0xff] %v2361
    %2452 = vst [vmem:[#allocation14 + $0x68] sm:$0xff] %v2364
    %2453 = vst [vmem:[#allocation14 + $0x70] sm:$0xff] %v2369
    %2454 = vst [vmem:[#allocation14 + $0x78] sm:$0xff] %v2372
    %2455 = vst [vmem:[#allocation14 + $0x80] sm:$0xff] %v2377
    %2456 = vst [vmem:[#allocation14 + $0x88] sm:$0xff] %v2380
    %2457 = vst [vmem:[#allocation14 + $0x90] sm:$0xff] %v2385
    %2458 = vst [vmem:[#allocation14 + $0x98] sm:$0xff] %v2388
    %2459 = vst [vmem:[#allocation14 + $0xa0] sm:$0xff] %v2393
    %2460 = vst [vmem:[#allocation14 + $0xa8] sm:$0xff] %v2396
    %2461 = vst [vmem:[#allocation14 + $0xb0] sm:$0xff] %v2401
    %2462 = vst [vmem:[#allocation14 + $0xb8] sm:$0xff] %v2404
    %2463 = vst [vmem:[#allocation14 + $0xc0] sm:$0xff] %v2409
    %2464 = vst [vmem:[#allocation14 + $0xc8] sm:$0xff] %v2412
    %2465 = vst [vmem:[#allocation14 + $0xd0] sm:$0xff] %v2417
    %2466 = vst [vmem:[#allocation14 + $0xd8] sm:$0xff] %v2420
    %2467 = vst [vmem:[#allocation14 + $0xe0] sm:$0xff] %v2425
    %2468 = vst [vmem:[#allocation14 + $0xe8] sm:$0xff] %v2428
    %2469 = vst [vmem:[#allocation14 + $0xf0] sm:$0xff] %v2433
    %2470 = vst [vmem:[#allocation14 + $0xf8] sm:$0xff] %v2436
    // Predicated region
    $region74: #{tpu_custom_call.1} parent=1 // pred_check
      _
    $region75: #{tpu_custom_call.1} parent=1 // pred_check_branch
      %2472 = sbr.rel (0) target = $region77
    $region76: #{tpu_custom_call.1} parent=1 // pred_region
      %s2474 = ssub.s32 4096, 4096
      %2475 = vsyncadd [#allocation4], %s2474
      %s2476 = sshll.u32 [#allocation14], 4
      %s2477 = int_to_ptr.vmem [resolvable:$true] %s2476
      %2482 = dma.vmem_to_hbm [thread:$0]  %s2477, 4096, %s11, [#allocation4], 128, 128, 8
    $region77: #{tpu_custom_call.1} parent=1 // pred_fallthru
      _
    // Predicated region
    $region78: #{tpu_custom_call.1} parent=1 // pred_check
      _
    $region79: #{tpu_custom_call.1} parent=1 // pred_check_branch
      %2484 = sbr.rel (0) target = $region81
    $region80: #{tpu_custom_call.1} parent=1 // pred_region
      %2485 = dma.done [#allocation4], 4096
    $region81: #{tpu_custom_call.1} parent=1 // pred_fallthru
      _
    %2486 = vsyncpa [#allocation3], 1
    %2487 = vsyncpa [#allocation6], 1
    %2488 = vsyncpa [#allocation9], 1
    %2489 = vsyncpa [#allocation12], 1
    %2490 = vsyncpa [#allocation4], 1

</llo_original>
